<compile_context>
chip_gen: v7x
topology: tpu7x:2x2x1
jax: 0.10.0
libtpu: 0.0.40
codegen_flags: <defaults>
</compile_context>

<pallas_src>
import functools
import math

import jax
import jax.numpy as jnp
from jax import lax
from jax.experimental import pallas as pl
from jax.experimental.pallas import tpu as pltpu


def mha_kernel(x_ref, wqkv_ref, wo_ref, bo_ref, o_ref, *,
               num_heads, d_head, mxu_dtype=None):
    """Causal multi-head attention for one block of batch elements.

    x_ref:    (Bblk, T, d_in)
    wqkv_ref: (H, d_in, 3*d_head)  per-head fused Q|K|V weight, Q pre-scaled
    wo_ref:   (H, d_head, d_out)   out-projection rows grouped per head
    bo_ref:   (1, d_out)
    o_ref:    (Bblk, T, d_out)
    """
    b_blk, t, d_in = x_ref.shape
    h = num_heads
    dh = d_head
    d_out = o_ref.shape[-1]
    bh = b_blk * h

    def mx(a):  # optional bf16 cast for MXU operands (v6e/v7x); accum stays f32
        return a if mxu_dtype is None else a.astype(mxu_dtype)

    # Replicate each batch row across heads so heads sit in the matmul batch dim
    # (avoids 8-lane-wide per-head slices / concat on the lane axis).
    x = x_ref[...]
    xh = jnp.broadcast_to(x[:, None], (b_blk, h, t, d_in)).reshape(bh, t, d_in)
    wqkv = jnp.broadcast_to(wqkv_ref[...][None], (b_blk, h, d_in, 3 * dh))
    wqkv = wqkv.reshape(bh, d_in, 3 * dh)

    # Single fused (batched) QKV projection on the MXU.
    qkv = jnp.einsum('btd,bde->bte', mx(xh), mx(wqkv),
                     preferred_element_type=jnp.float32)     # (BH, T, 3*dh)
    q = qkv[:, :, 0:dh]            # 1/sqrt(d_head) already folded into Q weight
    k = qkv[:, :, dh:2 * dh]
    v = qkv[:, :, 2 * dh:3 * dh]

    # All-heads attention scores in one batched matmul: (BH, T, T).
    s = jnp.einsum('bqd,bkd->bqk', mx(q), mx(k),
                   preferred_element_type=jnp.float32)

    # Causal mask as an additive, large-finite-negative bias (no -inf edge cases).
    row = lax.broadcasted_iota(jnp.int32, (t, t), 0)
    col = lax.broadcasted_iota(jnp.int32, (t, t), 1)
    bias = jnp.where(col <= row, jnp.float32(0.0), jnp.float32(-1e30))
    s = s + bias[None, :, :]

    # Numerically stable softmax; normalization via EUP approximate reciprocal.
    m = jnp.max(s, axis=-1, keepdims=True)
    p = jnp.exp(s - m)
    denom = jnp.sum(p, axis=-1, keepdims=True)
    w = p * pl.reciprocal(denom, approx=True)
    # TODO(synk): dropout with p>0 would need pltpu.prng_* masking; module default 0.0 is identity.

    ctx = jnp.einsum('bqk,bkd->bqd', mx(w), mx(v),
                     preferred_element_type=jnp.float32)     # (BH, T, dh)

    # Output projection with head-concat folded in:
    #   concat_h(ctx_h) @ Wo == sum_h ctx_h @ Wo[h*dh:(h+1)*dh, :]
    wo = jnp.broadcast_to(wo_ref[...][None], (b_blk, h, dh, d_out)).reshape(bh, dh, d_out)
    out_h = jnp.einsum('btd,bde->bte', mx(ctx), mx(wo),
                       preferred_element_type=jnp.float32)   # (BH, T, d_out)
    out = jnp.sum(out_h.reshape(b_blk, h, t, d_out), axis=1) + bo_ref[...]
    o_ref[...] = out.astype(o_ref.dtype)


def _pick_block_b(batch, tokens, target_rows=256):
    # Batch several sequences per grid step so each step does non-trivial work
    # (per-step pipeline overhead ~0.35us) while keeping the (Bblk*H, T, T)
    # score block modest. Must divide the batch.
    want = max(1, target_rows // max(tokens, 1))
    for cand in range(min(batch, want), 0, -1):
        if batch % cand == 0:
            return cand
    return 1


def multi_head_attention(x, wq, wk, wv, wo, bo, *, num_heads,
                         block_b=None, mxu_dtype=None):
    B, T, d_in = x.shape
    d_out = wq.shape[1]
    assert d_out % num_heads == 0
    d_head = d_out // num_heads
    scale = 1.0 / math.sqrt(d_head)

    # ---- host-side weight packing (one-time; folds into constants under jit) ----
    # Fused per-head Q|K|V weight with the softmax scale folded into Q columns.
    wq_h = (wq * scale).reshape(d_in, num_heads, d_head)
    wk_h = wk.reshape(d_in, num_heads, d_head)
    wv_h = wv.reshape(d_in, num_heads, d_head)
    wqkv = jnp.transpose(jnp.concatenate([wq_h, wk_h, wv_h], axis=-1), (1, 0, 2))
    # -> (H, d_in, 3*d_head)
    wo_h = wo.reshape(num_heads, d_head, d_out)          # (H, d_head, d_out)

    if block_b is None:
        block_b = _pick_block_b(B, T)
    assert B % block_b == 0

    kernel = functools.partial(mha_kernel, num_heads=num_heads, d_head=d_head,
                               mxu_dtype=mxu_dtype)

    # TODO(synk): for long context lengths, add a kv grid axis with online-softmax
    # (flash) accumulation instead of materializing the (Bblk*H, T, T) score block.
    return pl.pallas_call(
        kernel,
        out_shape=jax.ShapeDtypeStruct((B, T, d_out), x.dtype),
        grid=(B // block_b,),
        in_specs=[
            pl.BlockSpec((block_b, T, d_in), lambda b: (b, 0, 0)),
            pl.BlockSpec((num_heads, d_in, 3 * d_head), lambda b: (0, 0, 0)),
            pl.BlockSpec((num_heads, d_head, d_out), lambda b: (0, 0, 0)),
            pl.BlockSpec((1, d_out), lambda b: (0, 0)),
        ],
        out_specs=pl.BlockSpec((block_b, T, d_out), lambda b: (b, 0, 0)),
        compiler_params=pltpu.CompilerParams(
            dimension_semantics=("parallel",)),
    )(x, wqkv, wo_h, bo)


def reference_mha(x, wq, wk, wv, wo, bo, *, num_heads):
    B, T, d_in = x.shape
    d_out = wq.shape[1]
    d_head = d_out // num_heads
    q = x @ wq
    k = x @ wk
    v = x @ wv
    q = q.reshape(B, T, num_heads, d_head).transpose(0, 2, 1, 3)
    k = k.reshape(B, T, num_heads, d_head).transpose(0, 2, 1, 3)
    v = v.reshape(B, T, num_heads, d_head).transpose(0, 2, 1, 3)
    scores = jnp.einsum("bhqd,bhkd->bhqk", q, k)
    mask = jnp.triu(jnp.ones((T, T), dtype=bool), k=1)
    scores = jnp.where(mask[None, None], -jnp.inf, scores)
    weights = jax.nn.softmax(scores / jnp.sqrt(jnp.float32(d_head)), axis=-1)
    ctx = jnp.einsum("bhqk,bhkd->bqhd", weights, v).reshape(B, T, d_out)
    return ctx @ wo + bo[0]


if __name__ == "__main__":
    # Small shapes consistent with the module's forward:
    # x: (batch=2, tokens=8, d_in=32), d_out=32, num_heads=4, context_length=8
    B, T, D_IN, D_OUT, NUM_HEADS = 2, 8, 32, 32, 4

    key = jax.random.PRNGKey(0)
    kx, kq, kk, kv, ko, kb = jax.random.split(key, 6)

    x = jax.random.normal(kx, (B, T, D_IN), dtype=jnp.float32)
    wq = jax.random.normal(kq, (D_IN, D_OUT), dtype=jnp.float32) * 0.1
    wk = jax.random.normal(kk, (D_IN, D_OUT), dtype=jnp.float32) * 0.1
    wv = jax.random.normal(kv, (D_IN, D_OUT), dtype=jnp.float32) * 0.1
    wo = jax.random.normal(ko, (D_OUT, D_OUT), dtype=jnp.float32) * 0.1
    bo = jax.random.normal(kb, (1, D_OUT), dtype=jnp.float32) * 0.1

    out = multi_head_attention(x, wq, wk, wv, wo, bo, num_heads=NUM_HEADS)
    out = jax.block_until_ready(out)

    ref = reference_mha(x, wq, wk, wv, wo, bo, num_heads=NUM_HEADS)
    assert out.shape == (B, T, D_OUT)
    # Tolerance covers the EUP approximate reciprocal in the softmax normalization.
    assert jnp.allclose(out, ref, rtol=5e-3, atol=5e-3), "mismatch vs reference"

    print("KERNEL_OK")
</pallas_src>

<mosaic_0001>
module attributes {stable_mosaic.version = 11 : i64} {
  func.func @mha_kernel(%arg0: i32, %arg1: memref<2x8x32xf32, #tpu.memory_space<vmem>>, %arg2: memref<4x32x24xf32, #tpu.memory_space<vmem>>, %arg3: memref<4x8x32xf32, #tpu.memory_space<vmem>>, %arg4: memref<1x32xf32, #tpu.memory_space<vmem>>, %arg5: memref<2x8x32xf32, #tpu.memory_space<vmem>>) attributes {dimension_semantics = [#tpu.dimension_semantics<parallel>], iteration_bounds = array<i64: 1>, scalar_prefetch = 0 : i64, scratch_operands = 0 : i64, tpu.core_type = #tpu.core_type<tc>, window_params = [{transform_indices = @transform_0, window_bounds = array<i64: 2, 8, 32>}, {pipeline_mode = #tpu.pipeline_mode<synchronous>, transform_indices = @transform_1, window_bounds = array<i64: 4, 32, 24>}, {pipeline_mode = #tpu.pipeline_mode<synchronous>, transform_indices = @transform_2, window_bounds = array<i64: 4, 8, 32>}, {pipeline_mode = #tpu.pipeline_mode<synchronous>, transform_indices = @transform_3, window_bounds = array<i64: 1, 32>}, {transform_indices = @transform_4, window_bounds = array<i64: 2, 8, 32>}]} {
    %c0 = arith.constant 0 : index
    %c0_0 = arith.constant 0 : index
    %c0_1 = arith.constant 0 : index
    %0 = vector.load %arg1[%c0, %c0_0, %c0_1] : memref<2x8x32xf32, #tpu.memory_space<vmem>>, vector<2x8x32xf32>
    %1 = vector.shape_cast %0 : vector<2x8x32xf32> to vector<2x1x8x32xf32>
    %2 = vector.shape_cast %1 : vector<2x1x8x32xf32> to vector<2x1x8x32xf32>
    %3 = vector.broadcast %2 : vector<2x1x8x32xf32> to vector<2x4x8x32xf32>
    %4 = vector.shape_cast %3 : vector<2x4x8x32xf32> to vector<8x8x32xf32>
    %c0_2 = arith.constant 0 : index
    %c0_3 = arith.constant 0 : index
    %c0_4 = arith.constant 0 : index
    %5 = vector.load %arg2[%c0_2, %c0_3, %c0_4] : memref<4x32x24xf32, #tpu.memory_space<vmem>>, vector<4x32x24xf32>
    %6 = vector.shape_cast %5 : vector<4x32x24xf32> to vector<1x4x32x24xf32>
    %7 = vector.shape_cast %6 : vector<1x4x32x24xf32> to vector<1x4x32x24xf32>
    %8 = vector.broadcast %7 : vector<1x4x32x24xf32> to vector<2x4x32x24xf32>
    %9 = vector.shape_cast %8 : vector<2x4x32x24xf32> to vector<8x32x24xf32>
    "tpu.trace_start"() <{level = 10 : i32, message = "btd,bde->bte"}> : () -> ()
    %cst = arith.constant dense<0.000000e+00> : vector<8x8x24xf32>
    %10 = tpu.matmul %4, %9, %cst {dimension_numbers = #tpu.dot_dimension_numbers<[2], [1], [1], [2], [0, 0, 0, 1, 1, 2], [0], [0]>} : vector<8x8x32xf32>, vector<8x32x24xf32>, vector<8x8x24xf32> -> vector<8x8x24xf32>
    "tpu.trace_stop"() : () -> ()
    %11 = vector.extract_strided_slice %10 {offsets = [0, 0, 0], sizes = [8, 8, 8], strides = [1, 1, 1]} : vector<8x8x24xf32> to vector<8x8x8xf32>
    %12 = vector.extract_strided_slice %10 {offsets = [0, 0, 8], sizes = [8, 8, 8], strides = [1, 1, 1]} : vector<8x8x24xf32> to vector<8x8x8xf32>
    %13 = vector.extract_strided_slice %10 {offsets = [0, 0, 16], sizes = [8, 8, 8], strides = [1, 1, 1]} : vector<8x8x24xf32> to vector<8x8x8xf32>
    "tpu.trace_start"() <{level = 10 : i32, message = "bqd,bkd->bqk"}> : () -> ()
    %cst_5 = arith.constant dense<0.000000e+00> : vector<8x8x8xf32>
    %14 = tpu.matmul %11, %12, %cst_5 {dimension_numbers = #tpu.dot_dimension_numbers<[2], [2], [1], [1], [0, 0, 0, 1, 1, 1], [0], [0]>} : vector<8x8x8xf32>, vector<8x8x8xf32>, vector<8x8x8xf32> -> vector<8x8x8xf32>
    "tpu.trace_stop"() : () -> ()
    %15 = tpu.iota {dimensions = array<i32: 0>} : vector<8x8xi32>
    %16 = tpu.iota {dimensions = array<i32: 1>} : vector<8x8xi32>
    %17 = arith.cmpi sle, %16, %15 : vector<8x8xi32>
    %cst_6 = arith.constant 0.000000e+00 : f32
    %cst_7 = arith.constant -1.000000e+30 : f32
    %18 = vector.broadcast %cst_6 : f32 to vector<8x8xf32>
    %19 = vector.broadcast %cst_7 : f32 to vector<8x8xf32>
    %20 = arith.select %17, %18, %19 : vector<8x8xi1>, vector<8x8xf32>
    %21 = vector.shape_cast %20 : vector<8x8xf32> to vector<1x8x8xf32>
    %22 = vector.broadcast %21 : vector<1x8x8xf32> to vector<8x8x8xf32>
    %23 = arith.addf %14, %22 : vector<8x8x8xf32>
    %cst_8 = arith.constant dense<0xFF800000> : vector<8x8xf32>
    %24 = vector.multi_reduction <maximumf>, %23, %cst_8 [2] : vector<8x8x8xf32> to vector<8x8xf32>
    %25 = vector.shape_cast %24 : vector<8x8xf32> to vector<8x8x1xf32>
    %26 = vector.broadcast %25 : vector<8x8x1xf32> to vector<8x8x8xf32>
    %27 = arith.subf %23, %26 : vector<8x8x8xf32>
    %28 = math.exp %27 : vector<8x8x8xf32>
    %cst_9 = arith.constant dense<0.000000e+00> : vector<8x8xf32>
    %29 = vector.multi_reduction <add>, %28, %cst_9 [2] : vector<8x8x8xf32> to vector<8x8xf32>
    %30 = vector.shape_cast %29 : vector<8x8xf32> to vector<8x8x1xf32>
    %31 = tpu.reciprocal %30 {approx = true} : vector<8x8x1xf32> -> vector<8x8x1xf32>
    %32 = vector.broadcast %31 : vector<8x8x1xf32> to vector<8x8x8xf32>
    %33 = arith.mulf %28, %32 : vector<8x8x8xf32>
    "tpu.trace_start"() <{level = 10 : i32, message = "bqk,bkd->bqd"}> : () -> ()
    %cst_10 = arith.constant dense<0.000000e+00> : vector<8x8x8xf32>
    %34 = tpu.matmul %33, %13, %cst_10 {dimension_numbers = #tpu.dot_dimension_numbers<[2], [1], [1], [2], [0, 0, 0, 1, 1, 2], [0], [0]>} : vector<8x8x8xf32>, vector<8x8x8xf32>, vector<8x8x8xf32> -> vector<8x8x8xf32>
    "tpu.trace_stop"() : () -> ()
    %c0_11 = arith.constant 0 : index
    %c0_12 = arith.constant 0 : index
    %c0_13 = arith.constant 0 : index
    %35 = vector.load %arg3[%c0_11, %c0_12, %c0_13] : memref<4x8x32xf32, #tpu.memory_space<vmem>>, vector<4x8x32xf32>
    %36 = vector.shape_cast %35 : vector<4x8x32xf32> to vector<1x4x8x32xf32>
    %37 = vector.shape_cast %36 : vector<1x4x8x32xf32> to vector<1x4x8x32xf32>
    %38 = vector.broadcast %37 : vector<1x4x8x32xf32> to vector<2x4x8x32xf32>
    %39 = vector.shape_cast %38 : vector<2x4x8x32xf32> to vector<8x8x32xf32>
    "tpu.trace_start"() <{level = 10 : i32, message = "btd,bde->bte"}> : () -> ()
    %cst_14 = arith.constant dense<0.000000e+00> : vector<8x8x32xf32>
    %40 = tpu.matmul %34, %39, %cst_14 {dimension_numbers = #tpu.dot_dimension_numbers<[2], [1], [1], [2], [0, 0, 0, 1, 1, 2], [0], [0]>} : vector<8x8x8xf32>, vector<8x8x32xf32>, vector<8x8x32xf32> -> vector<8x8x32xf32>
    "tpu.trace_stop"() : () -> ()
    %41 = vector.shape_cast %40 : vector<8x8x32xf32> to vector<2x4x8x32xf32>
    %cst_15 = arith.constant dense<0.000000e+00> : vector<2x8x32xf32>
    %42 = vector.multi_reduction <add>, %41, %cst_15 [1] : vector<2x4x8x32xf32> to vector<2x8x32xf32>
    %c0_16 = arith.constant 0 : index
    %c0_17 = arith.constant 0 : index
    %43 = vector.load %arg4[%c0_16, %c0_17] : memref<1x32xf32, #tpu.memory_space<vmem>>, vector<1x32xf32>
    %44 = vector.shape_cast %43 : vector<1x32xf32> to vector<1x1x32xf32>
    %45 = vector.broadcast %44 : vector<1x1x32xf32> to vector<2x8x32xf32>
    %46 = arith.addf %42, %45 : vector<2x8x32xf32>
    %c0_18 = arith.constant 0 : index
    %c0_19 = arith.constant 0 : index
    %c0_20 = arith.constant 0 : index
    %47 = vector.load %arg5[%c0_18, %c0_19, %c0_20] : memref<2x8x32xf32, #tpu.memory_space<vmem>>, vector<2x8x32xf32>
    tpu.vector_store %arg5[%c0_18, %c0_19, %c0_20], %46 {strides = array<i32>} : memref<2x8x32xf32, #tpu.memory_space<vmem>>, vector<2x8x32xf32>,
    return
  }
  func.func @transform_0(%arg0: i32) -> (i32, i32, i32) {
    %c0_i32 = arith.constant 0 : i32
    %c0_i32_0 = arith.constant 0 : i32
    %c0_i32_1 = arith.constant 0 : i32
    return %arg0, %c0_i32, %c0_i32_0 : i32, i32, i32
  }
  func.func @transform_1(%arg0: i32) -> (i32, i32, i32) {
    %c0_i32 = arith.constant 0 : i32
    %c0_i32_0 = arith.constant 0 : i32
    %c0_i32_1 = arith.constant 0 : i32
    %c0_i32_2 = arith.constant 0 : i32
    return %c0_i32, %c0_i32_0, %c0_i32_1 : i32, i32, i32
  }
  func.func @transform_2(%arg0: i32) -> (i32, i32, i32) {
    %c0_i32 = arith.constant 0 : i32
    %c0_i32_0 = arith.constant 0 : i32
    %c0_i32_1 = arith.constant 0 : i32
    %c0_i32_2 = arith.constant 0 : i32
    return %c0_i32, %c0_i32_0, %c0_i32_1 : i32, i32, i32
  }
  func.func @transform_3(%arg0: i32) -> (i32, i32) {
    %c0_i32 = arith.constant 0 : i32
    %c0_i32_0 = arith.constant 0 : i32
    %c0_i32_1 = arith.constant 0 : i32
    return %c0_i32, %c0_i32_0 : i32, i32
  }
  func.func @transform_4(%arg0: i32) -> (i32, i32, i32) {
    %c0_i32 = arith.constant 0 : i32
    %c0_i32_0 = arith.constant 0 : i32
    %c0_i32_1 = arith.constant 0 : i32
    return %arg0, %c0_i32, %c0_i32_0 : i32, i32, i32
  }
}

</mosaic_0001>

<llo_original>
// kernel: tpu_custom_call.1
$region0: #{tpu_custom_call.1}
  #allocation0 [shape = 'u32[]', space=smem, size = 0x4, offset = 0x4, fixed_abs, tag = 'smem constant byte address 0x4 - core index']
  #allocation1 [shape = 'u32[144,128]{1,0:T(1,128)}', space=vmem, size = 0x12000, scoped, tag = 'internal scratch']
  %s0 = inlined_call_operand.vmem [shape: f32[2,8,32], index: 0, kind: input, shape index: {}]
  %s1 = inlined_call_operand.vmem [shape: f32[4,32,24], index: 1, kind: input, shape index: {}]
  %s2 = inlined_call_operand.vmem [shape: f32[4,8,32], index: 2, kind: input, shape index: {}]
  %s3 = inlined_call_operand.vmem [shape: f32[1,32], index: 3, kind: input, shape index: {}]
  %s4 = inlined_call_operand.hbm [shape: f32[2,8,32], index: 4, kind: output, shape index: {}]
  %s5 = sld [smem:[#allocation0]]
  $region26: #{tpu_custom_call.1} parent=0
    _
  %s7 = ssub.s32 1, %s5
  %s8 = scalar_select 0, %s7, %s5
  $region1: #{tpu_custom_call.1} parent=0
    #allocation2 [shape = 'u8[8192]{0}', space=vmem, size = 0x2000, scoped, tag = 'output window, operand 0, single buffered']
    #allocation3 [shape = 's32[1]{0}', space=sflag, size = 0x4, scoped, tag = 'scoped memory for tpu_custom_call.1']
    %9 = vsyncpa [#allocation3], 0
    // Predicated region
    $region2: #{tpu_custom_call.1} parent=1 // pred_check
      _
    $region3: #{tpu_custom_call.1} parent=1 // pred_check_branch
      %11 = sbr.rel (0) target = $region5
    $region4: #{tpu_custom_call.1} parent=1 // pred_region
      _
    $region5: #{tpu_custom_call.1} parent=1 // pred_fallthru
      _
    // Predicated region
    $region6: #{tpu_custom_call.1} parent=1 // pred_check
      _
    $region7: #{tpu_custom_call.1} parent=1 // pred_check_branch
      %13 = sbr.rel (0) target = $region9
    $region8: #{tpu_custom_call.1} parent=1 // pred_region
      _
    $region9: #{tpu_custom_call.1} parent=1 // pred_fallthru
      _
    // Predicated region
    $region10: #{tpu_custom_call.1} parent=1 // pred_check
      _
    $region11: #{tpu_custom_call.1} parent=1 // pred_check_branch
      %15 = sbr.rel (0) target = $region13
    $region12: #{tpu_custom_call.1} parent=1 // pred_region
      _
    $region13: #{tpu_custom_call.1} parent=1 // pred_fallthru
      _
    // Predicated region
    $region14: #{tpu_custom_call.1} parent=1 // pred_check
      _
    $region15: #{tpu_custom_call.1} parent=1 // pred_check_branch
      %17 = sbr.rel (0) target = $region17
    $region16: #{tpu_custom_call.1} parent=1 // pred_region
      _
    $region17: #{tpu_custom_call.1} parent=1 // pred_fallthru
      _
    %v18 = vld [vmem:[%s0] sm:$0xff]
    %v19 = vld [vmem:[%s0 + $0x8] sm:$0xff]
    %v20 = vld [vmem:[%s1] sm:$0xff]
    %v21 = vld [vmem:[%s1 + $0x8] sm:$0xff]
    %v22 = vld [vmem:[%s1 + $0x10] sm:$0xff]
    %v23 = vld [vmem:[%s1 + $0x18] sm:$0xff]
    %v24 = vld [vmem:[%s1 + $0x20] sm:$0xff]
    %v25 = vld [vmem:[%s1 + $0x28] sm:$0xff]
    %v26 = vld [vmem:[%s1 + $0x30] sm:$0xff]
    %v27 = vld [vmem:[%s1 + $0x38] sm:$0xff]
    %v28 = vld [vmem:[%s1 + $0x40] sm:$0xff]
    %v29 = vld [vmem:[%s1 + $0x48] sm:$0xff]
    %v30 = vld [vmem:[%s1 + $0x50] sm:$0xff]
    %v31 = vld [vmem:[%s1 + $0x58] sm:$0xff]
    %v32 = vld [vmem:[%s1 + $0x60] sm:$0xff]
    %v33 = vld [vmem:[%s1 + $0x68] sm:$0xff]
    %v34 = vld [vmem:[%s1 + $0x70] sm:$0xff]
    %v35 = vld [vmem:[%s1 + $0x78] sm:$0xff]
    %vm36 = vcmask 261120
    %v38 = vsel %vm36, %v18, 0
    %40 = vmatprep.subr.mxu0 0.0
    %41 = vmatpush1.msra.mxu0 %v20
    %42 = vmatprep.subr.mxu0 0.0
    %43 = vmatpush1.msra.mxu0 %v21
    %44 = vmatprep.subr.mxu0 0.0
    %45 = vmatpush1.msra.mxu0 %v22
    %46 = vmatprep.subr.mxu0 0.0
    %47 = vmatpush1.msra.mxu0 %v23
    %48 = vmatprep.subr.mxu0 0.0
    %49 = vmatpush1.msra.mxu0 0.0
    %50 = vmatprep.subr.mxu0 0.0
    %51 = vmatpush1.msra.mxu0 0.0
    %52 = vmatprep.subr.mxu0 0.0
    %53 = vmatpush1.msra.mxu0 0.0
    %54 = vmatprep.subr.mxu0 0.0
    %55 = vmatpush1.msra.mxu0 0.0
    %56 = vmatprep.subr.mxu0 0.0
    %57 = vmatpush1.msra.mxu0 0.0
    %58 = vmatprep.subr.mxu0 0.0
    %59 = vmatpush1.msra.mxu0 0.0
    %60 = vmatprep.subr.mxu0 0.0
    %61 = vmatpush1.msra.mxu0 0.0
    %62 = vmatprep.subr.mxu0 0.0
    %63 = vmatpush1.msra.mxu0 0.0
    %64 = vmatprep.subr.mxu0 0.0
    %65 = vmatpush1.msra.mxu0 0.0
    %66 = vmatprep.subr.mxu0 0.0
    %67 = vmatpush1.msra.mxu0 0.0
    %68 = vmatprep.subr.mxu0 0.0
    %69 = vmatpush1.msra.mxu0 0.0
    %70 = vmatprep.subr.mxu0 0.0
    %71 = vmatpush1.msra.mxu0 0.0
    %72 = vmatprep.subr.mxu0 0.0
    %73 = vmatpush1.msra.mxu0 0.0
    %74 = vmatprep.subr.mxu0 0.0
    %75 = vmatpush1.msra.mxu0 0.0
    %76 = vmatprep.subr.mxu0 0.0
    %77 = vmatpush1.msra.mxu0 0.0
    %78 = vmatprep.subr.mxu0 0.0
    %79 = vmatpush1.msra.mxu0 0.0
    %80 = vmatprep.subr.mxu0 0.0
    %81 = vmatpush1.msra.mxu0 0.0
    %82 = vmatprep.subr.mxu0 0.0
    %83 = vmatpush1.msra.mxu0 0.0
    %84 = vmatprep.subr.mxu0 0.0
    %85 = vmatpush1.msra.mxu0 0.0
    %86 = vmatprep.subr.mxu0 0.0
    %87 = vmatpush1.msra.mxu0 0.0
    %88 = vmatprep.subr.mxu0 0.0
    %89 = vmatpush1.msra.mxu0 0.0
    %90 = vmatprep.subr.mxu0 0.0
    %91 = vmatpush1.msra.mxu0 0.0
    %92 = vmatprep.subr.mxu0 0.0
    %93 = vmatpush1.msra.mxu0 0.0
    %94 = vmatprep.subr.mxu0 0.0
    %95 = vmatpush1.msra.mxu0 0.0
    %96 = vmatprep.subr.mxu0 0.0
    %97 = vmatpush1.msra.mxu0 0.0
    %98 = vmatprep.subr.mxu0 0.0
    %99 = vmatpush1.msra.mxu0 0.0
    %100 = vmatprep.subr.mxu0 0.0
    %101 = vmatpush1.msra.mxu0 0.0
    %102 = vmatprep.subr.mxu0 0.0
    %103 = vmatpush1.msra.mxu0 0.0
    %104 = vmatprep.mubr.f32.mxu0 0.0
    %105 = vmatmul.mubr.f32.gmra.mrb[0].mxu0 %v38
    %v106 = vpop.f32.mrb[0].mxu0
    %v107 = vadd.f32 0.0, %v106
    %v108 = vpop.f32.mrb[0].mxu0
    %109 = vdwg.mxu0
    %110 = vmatprep.subr.mxu0 0.0
    %111 = vmatpush1.msra.mxu0 %v24
    %112 = vmatprep.subr.mxu0 0.0
    %113 = vmatpush1.msra.mxu0 %v25
    %114 = vmatprep.subr.mxu0 0.0
    %115 = vmatpush1.msra.mxu0 %v26
    %116 = vmatprep.subr.mxu0 0.0
    %117 = vmatpush1.msra.mxu0 %v27
    %118 = vmatprep.subr.mxu0 0.0
    %119 = vmatpush1.msra.mxu0 0.0
    %120 = vmatprep.subr.mxu0 0.0
    %121 = vmatpush1.msra.mxu0 0.0
    %122 = vmatprep.subr.mxu0 0.0
    %123 = vmatpush1.msra.mxu0 0.0
    %124 = vmatprep.subr.mxu0 0.0
    %125 = vmatpush1.msra.mxu0 0.0
    %126 = vmatprep.subr.mxu0 0.0
    %127 = vmatpush1.msra.mxu0 0.0
    %128 = vmatprep.subr.mxu0 0.0
    %129 = vmatpush1.msra.mxu0 0.0
    %130 = vmatprep.subr.mxu0 0.0
    %131 = vmatpush1.msra.mxu0 0.0
    %132 = vmatprep.subr.mxu0 0.0
    %133 = vmatpush1.msra.mxu0 0.0
    %134 = vmatprep.subr.mxu0 0.0
    %135 = vmatpush1.msra.mxu0 0.0
    %136 = vmatprep.subr.mxu0 0.0
    %137 = vmatpush1.msra.mxu0 0.0
    %138 = vmatprep.subr.mxu0 0.0
    %139 = vmatpush1.msra.mxu0 0.0
    %140 = vmatprep.subr.mxu0 0.0
    %141 = vmatpush1.msra.mxu0 0.0
    %142 = vmatprep.subr.mxu0 0.0
    %143 = vmatpush1.msra.mxu0 0.0
    %144 = vmatprep.subr.mxu0 0.0
    %145 = vmatpush1.msra.mxu0 0.0
    %146 = vmatprep.subr.mxu0 0.0
    %147 = vmatpush1.msra.mxu0 0.0
    %148 = vmatprep.subr.mxu0 0.0
    %149 = vmatpush1.msra.mxu0 0.0
    %150 = vmatprep.subr.mxu0 0.0
    %151 = vmatpush1.msra.mxu0 0.0
    %152 = vmatprep.subr.mxu0 0.0
    %153 = vmatpush1.msra.mxu0 0.0
    %154 = vmatprep.subr.mxu0 0.0
    %155 = vmatpush1.msra.mxu0 0.0
    %156 = vmatprep.subr.mxu0 0.0
    %157 = vmatpush1.msra.mxu0 0.0
    %158 = vmatprep.subr.mxu0 0.0
    %159 = vmatpush1.msra.mxu0 0.0
    %160 = vmatprep.subr.mxu0 0.0
    %161 = vmatpush1.msra.mxu0 0.0
    %162 = vmatprep.subr.mxu0 0.0
    %163 = vmatpush1.msra.mxu0 0.0
    %164 = vmatprep.subr.mxu0 0.0
    %165 = vmatpush1.msra.mxu0 0.0
    %166 = vmatprep.subr.mxu0 0.0
    %167 = vmatpush1.msra.mxu0 0.0
    %168 = vmatprep.subr.mxu0 0.0
    %169 = vmatpush1.msra.mxu0 0.0
    %170 = vmatprep.subr.mxu0 0.0
    %171 = vmatpush1.msra.mxu0 0.0
    %172 = vmatprep.subr.mxu0 0.0
    %173 = vmatpush1.msra.mxu0 0.0
    %174 = vmatprep.mubr.f32.mxu0 0.0
    %175 = vmatmul.mubr.f32.gmra.mrb[0].mxu0 %v38
    %v176 = vpop.f32.mrb[0].mxu0
    %v177 = vadd.f32 0.0, %v176
    %v178 = vpop.f32.mrb[0].mxu0
    %179 = vdwg.mxu0
    %180 = vmatprep.subr.mxu0 0.0
    %181 = vmatpush1.msra.mxu0 %v28
    %182 = vmatprep.subr.mxu0 0.0
    %183 = vmatpush1.msra.mxu0 %v29
    %184 = vmatprep.subr.mxu0 0.0
    %185 = vmatpush1.msra.mxu0 %v30
    %186 = vmatprep.subr.mxu0 0.0
    %187 = vmatpush1.msra.mxu0 %v31
    %188 = vmatprep.subr.mxu0 0.0
    %189 = vmatpush1.msra.mxu0 0.0
    %190 = vmatprep.subr.mxu0 0.0
    %191 = vmatpush1.msra.mxu0 0.0
    %192 = vmatprep.subr.mxu0 0.0
    %193 = vmatpush1.msra.mxu0 0.0
    %194 = vmatprep.subr.mxu0 0.0
    %195 = vmatpush1.msra.mxu0 0.0
    %196 = vmatprep.subr.mxu0 0.0
    %197 = vmatpush1.msra.mxu0 0.0
    %198 = vmatprep.subr.mxu0 0.0
    %199 = vmatpush1.msra.mxu0 0.0
    %200 = vmatprep.subr.mxu0 0.0
    %201 = vmatpush1.msra.mxu0 0.0
    %202 = vmatprep.subr.mxu0 0.0
    %203 = vmatpush1.msra.mxu0 0.0
    %204 = vmatprep.subr.mxu0 0.0
    %205 = vmatpush1.msra.mxu0 0.0
    %206 = vmatprep.subr.mxu0 0.0
    %207 = vmatpush1.msra.mxu0 0.0
    %208 = vmatprep.subr.mxu0 0.0
    %209 = vmatpush1.msra.mxu0 0.0
    %210 = vmatprep.subr.mxu0 0.0
    %211 = vmatpush1.msra.mxu0 0.0
    %212 = vmatprep.subr.mxu0 0.0
    %213 = vmatpush1.msra.mxu0 0.0
    %214 = vmatprep.subr.mxu0 0.0
    %215 = vmatpush1.msra.mxu0 0.0
    %216 = vmatprep.subr.mxu0 0.0
    %217 = vmatpush1.msra.mxu0 0.0
    %218 = vmatprep.subr.mxu0 0.0
    %219 = vmatpush1.msra.mxu0 0.0
    %220 = vmatprep.subr.mxu0 0.0
    %221 = vmatpush1.msra.mxu0 0.0
    %222 = vmatprep.subr.mxu0 0.0
    %223 = vmatpush1.msra.mxu0 0.0
    %224 = vmatprep.subr.mxu0 0.0
    %225 = vmatpush1.msra.mxu0 0.0
    %226 = vmatprep.subr.mxu0 0.0
    %227 = vmatpush1.msra.mxu0 0.0
    %228 = vmatprep.subr.mxu0 0.0
    %229 = vmatpush1.msra.mxu0 0.0
    %230 = vmatprep.subr.mxu0 0.0
    %231 = vmatpush1.msra.mxu0 0.0
    %232 = vmatprep.subr.mxu0 0.0
    %233 = vmatpush1.msra.mxu0 0.0
    %234 = vmatprep.subr.mxu0 0.0
    %235 = vmatpush1.msra.mxu0 0.0
    %236 = vmatprep.subr.mxu0 0.0
    %237 = vmatpush1.msra.mxu0 0.0
    %238 = vmatprep.subr.mxu0 0.0
    %239 = vmatpush1.msra.mxu0 0.0
    %240 = vmatprep.subr.mxu0 0.0
    %241 = vmatpush1.msra.mxu0 0.0
    %242 = vmatprep.subr.mxu0 0.0
    %243 = vmatpush1.msra.mxu0 0.0
    %244 = vmatprep.mubr.f32.mxu0 0.0
    %245 = vmatmul.mubr.f32.gmra.mrb[0].mxu0 %v38
    %v246 = vpop.f32.mrb[0].mxu0
    %v247 = vadd.f32 0.0, %v246
    %v248 = vpop.f32.mrb[0].mxu0
    %249 = vdwg.mxu0
    %250 = vmatprep.subr.mxu0 0.0
    %251 = vmatpush1.msra.mxu0 %v32
    %252 = vmatprep.subr.mxu0 0.0
    %253 = vmatpush1.msra.mxu0 %v33
    %254 = vmatprep.subr.mxu0 0.0
    %255 = vmatpush1.msra.mxu0 %v34
    %256 = vmatprep.subr.mxu0 0.0
    %257 = vmatpush1.msra.mxu0 %v35
    %258 = vmatprep.subr.mxu0 0.0
    %259 = vmatpush1.msra.mxu0 0.0
    %260 = vmatprep.subr.mxu0 0.0
    %261 = vmatpush1.msra.mxu0 0.0
    %262 = vmatprep.subr.mxu0 0.0
    %263 = vmatpush1.msra.mxu0 0.0
    %264 = vmatprep.subr.mxu0 0.0
    %265 = vmatpush1.msra.mxu0 0.0
    %266 = vmatprep.subr.mxu0 0.0
    %267 = vmatpush1.msra.mxu0 0.0
    %268 = vmatprep.subr.mxu0 0.0
    %269 = vmatpush1.msra.mxu0 0.0
    %270 = vmatprep.subr.mxu0 0.0
    %271 = vmatpush1.msra.mxu0 0.0
    %272 = vmatprep.subr.mxu0 0.0
    %273 = vmatpush1.msra.mxu0 0.0
    %274 = vmatprep.subr.mxu0 0.0
    %275 = vmatpush1.msra.mxu0 0.0
    %276 = vmatprep.subr.mxu0 0.0
    %277 = vmatpush1.msra.mxu0 0.0
    %278 = vmatprep.subr.mxu0 0.0
    %279 = vmatpush1.msra.mxu0 0.0
    %280 = vmatprep.subr.mxu0 0.0
    %281 = vmatpush1.msra.mxu0 0.0
    %282 = vmatprep.subr.mxu0 0.0
    %283 = vmatpush1.msra.mxu0 0.0
    %284 = vmatprep.subr.mxu0 0.0
    %285 = vmatpush1.msra.mxu0 0.0
    %286 = vmatprep.subr.mxu0 0.0
    %287 = vmatpush1.msra.mxu0 0.0
    %288 = vmatprep.subr.mxu0 0.0
    %289 = vmatpush1.msra.mxu0 0.0
    %290 = vmatprep.subr.mxu0 0.0
    %291 = vmatpush1.msra.mxu0 0.0
    %292 = vmatprep.subr.mxu0 0.0
    %293 = vmatpush1.msra.mxu0 0.0
    %294 = vmatprep.subr.mxu0 0.0
    %295 = vmatpush1.msra.mxu0 0.0
    %296 = vmatprep.subr.mxu0 0.0
    %297 = vmatpush1.msra.mxu0 0.0
    %298 = vmatprep.subr.mxu0 0.0
    %299 = vmatpush1.msra.mxu0 0.0
    %300 = vmatprep.subr.mxu0 0.0
    %301 = vmatpush1.msra.mxu0 0.0
    %302 = vmatprep.subr.mxu0 0.0
    %303 = vmatpush1.msra.mxu0 0.0
    %304 = vmatprep.subr.mxu0 0.0
    %305 = vmatpush1.msra.mxu0 0.0
    %306 = vmatprep.subr.mxu0 0.0
    %307 = vmatpush1.msra.mxu0 0.0
    %308 = vmatprep.subr.mxu0 0.0
    %309 = vmatpush1.msra.mxu0 0.0
    %310 = vmatprep.subr.mxu0 0.0
    %311 = vmatpush1.msra.mxu0 0.0
    %312 = vmatprep.subr.mxu0 0.0
    %313 = vmatpush1.msra.mxu0 0.0
    %314 = vmatprep.mubr.f32.mxu0 0.0
    %315 = vmatmul.mubr.f32.gmra.mrb[0].mxu0 %v38
    %v316 = vpop.f32.mrb[0].mxu0
    %v317 = vadd.f32 0.0, %v316
    %v318 = vpop.f32.mrb[0].mxu0
    %319 = vdwg.mxu0
    %v321 = vsel %vm36, %v19, 0
    %323 = vmatprep.subr.mxu0 0.0
    %324 = vmatpush1.msra.mxu0 %v20
    %325 = vmatprep.subr.mxu0 0.0
    %326 = vmatpush1.msra.mxu0 %v21
    %327 = vmatprep.subr.mxu0 0.0
    %328 = vmatpush1.msra.mxu0 %v22
    %329 = vmatprep.subr.mxu0 0.0
    %330 = vmatpush1.msra.mxu0 %v23
    %331 = vmatprep.subr.mxu0 0.0
    %332 = vmatpush1.msra.mxu0 0.0
    %333 = vmatprep.subr.mxu0 0.0
    %334 = vmatpush1.msra.mxu0 0.0
    %335 = vmatprep.subr.mxu0 0.0
    %336 = vmatpush1.msra.mxu0 0.0
    %337 = vmatprep.subr.mxu0 0.0
    %338 = vmatpush1.msra.mxu0 0.0
    %339 = vmatprep.subr.mxu0 0.0
    %340 = vmatpush1.msra.mxu0 0.0
    %341 = vmatprep.subr.mxu0 0.0
    %342 = vmatpush1.msra.mxu0 0.0
    %343 = vmatprep.subr.mxu0 0.0
    %344 = vmatpush1.msra.mxu0 0.0
    %345 = vmatprep.subr.mxu0 0.0
    %346 = vmatpush1.msra.mxu0 0.0
    %347 = vmatprep.subr.mxu0 0.0
    %348 = vmatpush1.msra.mxu0 0.0
    %349 = vmatprep.subr.mxu0 0.0
    %350 = vmatpush1.msra.mxu0 0.0
    %351 = vmatprep.subr.mxu0 0.0
    %352 = vmatpush1.msra.mxu0 0.0
    %353 = vmatprep.subr.mxu0 0.0
    %354 = vmatpush1.msra.mxu0 0.0
    %355 = vmatprep.subr.mxu0 0.0
    %356 = vmatpush1.msra.mxu0 0.0
    %357 = vmatprep.subr.mxu0 0.0
    %358 = vmatpush1.msra.mxu0 0.0
    %359 = vmatprep.subr.mxu0 0.0
    %360 = vmatpush1.msra.mxu0 0.0
    %361 = vmatprep.subr.mxu0 0.0
    %362 = vmatpush1.msra.mxu0 0.0
    %363 = vmatprep.subr.mxu0 0.0
    %364 = vmatpush1.msra.mxu0 0.0
    %365 = vmatprep.subr.mxu0 0.0
    %366 = vmatpush1.msra.mxu0 0.0
    %367 = vmatprep.subr.mxu0 0.0
    %368 = vmatpush1.msra.mxu0 0.0
    %369 = vmatprep.subr.mxu0 0.0
    %370 = vmatpush1.msra.mxu0 0.0
    %371 = vmatprep.subr.mxu0 0.0
    %372 = vmatpush1.msra.mxu0 0.0
    %373 = vmatprep.subr.mxu0 0.0
    %374 = vmatpush1.msra.mxu0 0.0
    %375 = vmatprep.subr.mxu0 0.0
    %376 = vmatpush1.msra.mxu0 0.0
    %377 = vmatprep.subr.mxu0 0.0
    %378 = vmatpush1.msra.mxu0 0.0
    %379 = vmatprep.subr.mxu0 0.0
    %380 = vmatpush1.msra.mxu0 0.0
    %381 = vmatprep.subr.mxu0 0.0
    %382 = vmatpush1.msra.mxu0 0.0
    %383 = vmatprep.subr.mxu0 0.0
    %384 = vmatpush1.msra.mxu0 0.0
    %385 = vmatprep.subr.mxu0 0.0
    %386 = vmatpush1.msra.mxu0 0.0
    %387 = vmatprep.mubr.f32.mxu0 0.0
    %388 = vmatmul.mubr.f32.gmra.mrb[0].mxu0 %v321
    %v389 = vpop.f32.mrb[0].mxu0
    %v390 = vadd.f32 0.0, %v389
    %v391 = vpop.f32.mrb[0].mxu0
    %392 = vdwg.mxu0
    %393 = vmatprep.subr.mxu0 0.0
    %394 = vmatpush1.msra.mxu0 %v24
    %395 = vmatprep.subr.mxu0 0.0
    %396 = vmatpush1.msra.mxu0 %v25
    %397 = vmatprep.subr.mxu0 0.0
    %398 = vmatpush1.msra.mxu0 %v26
    %399 = vmatprep.subr.mxu0 0.0
    %400 = vmatpush1.msra.mxu0 %v27
    %401 = vmatprep.subr.mxu0 0.0
    %402 = vmatpush1.msra.mxu0 0.0
    %403 = vmatprep.subr.mxu0 0.0
    %404 = vmatpush1.msra.mxu0 0.0
    %405 = vmatprep.subr.mxu0 0.0
    %406 = vmatpush1.msra.mxu0 0.0
    %407 = vmatprep.subr.mxu0 0.0
    %408 = vmatpush1.msra.mxu0 0.0
    %409 = vmatprep.subr.mxu0 0.0
    %410 = vmatpush1.msra.mxu0 0.0
    %411 = vmatprep.subr.mxu0 0.0
    %412 = vmatpush1.msra.mxu0 0.0
    %413 = vmatprep.subr.mxu0 0.0
    %414 = vmatpush1.msra.mxu0 0.0
    %415 = vmatprep.subr.mxu0 0.0
    %416 = vmatpush1.msra.mxu0 0.0
    %417 = vmatprep.subr.mxu0 0.0
    %418 = vmatpush1.msra.mxu0 0.0
    %419 = vmatprep.subr.mxu0 0.0
    %420 = vmatpush1.msra.mxu0 0.0
    %421 = vmatprep.subr.mxu0 0.0
    %422 = vmatpush1.msra.mxu0 0.0
    %423 = vmatprep.subr.mxu0 0.0
    %424 = vmatpush1.msra.mxu0 0.0
    %425 = vmatprep.subr.mxu0 0.0
    %426 = vmatpush1.msra.mxu0 0.0
    %427 = vmatprep.subr.mxu0 0.0
    %428 = vmatpush1.msra.mxu0 0.0
    %429 = vmatprep.subr.mxu0 0.0
    %430 = vmatpush1.msra.mxu0 0.0
    %431 = vmatprep.subr.mxu0 0.0
    %432 = vmatpush1.msra.mxu0 0.0
    %433 = vmatprep.subr.mxu0 0.0
    %434 = vmatpush1.msra.mxu0 0.0
    %435 = vmatprep.subr.mxu0 0.0
    %436 = vmatpush1.msra.mxu0 0.0
    %437 = vmatprep.subr.mxu0 0.0
    %438 = vmatpush1.msra.mxu0 0.0
    %439 = vmatprep.subr.mxu0 0.0
    %440 = vmatpush1.msra.mxu0 0.0
    %441 = vmatprep.subr.mxu0 0.0
    %442 = vmatpush1.msra.mxu0 0.0
    %443 = vmatprep.subr.mxu0 0.0
    %444 = vmatpush1.msra.mxu0 0.0
    %445 = vmatprep.subr.mxu0 0.0
    %446 = vmatpush1.msra.mxu0 0.0
    %447 = vmatprep.subr.mxu0 0.0
    %448 = vmatpush1.msra.mxu0 0.0
    %449 = vmatprep.subr.mxu0 0.0
    %450 = vmatpush1.msra.mxu0 0.0
    %451 = vmatprep.subr.mxu0 0.0
    %452 = vmatpush1.msra.mxu0 0.0
    %453 = vmatprep.subr.mxu0 0.0
    %454 = vmatpush1.msra.mxu0 0.0
    %455 = vmatprep.subr.mxu0 0.0
    %456 = vmatpush1.msra.mxu0 0.0
    %457 = vmatprep.mubr.f32.mxu0 0.0
    %458 = vmatmul.mubr.f32.gmra.mrb[0].mxu0 %v321
    %v459 = vpop.f32.mrb[0].mxu0
    %v460 = vadd.f32 0.0, %v459
    %v461 = vpop.f32.mrb[0].mxu0
    %462 = vdwg.mxu0
    %463 = vmatprep.subr.mxu0 0.0
    %464 = vmatpush1.msra.mxu0 %v28
    %465 = vmatprep.subr.mxu0 0.0
    %466 = vmatpush1.msra.mxu0 %v29
    %467 = vmatprep.subr.mxu0 0.0
    %468 = vmatpush1.msra.mxu0 %v30
    %469 = vmatprep.subr.mxu0 0.0
    %470 = vmatpush1.msra.mxu0 %v31
    %471 = vmatprep.subr.mxu0 0.0
    %472 = vmatpush1.msra.mxu0 0.0
    %473 = vmatprep.subr.mxu0 0.0
    %474 = vmatpush1.msra.mxu0 0.0
    %475 = vmatprep.subr.mxu0 0.0
    %476 = vmatpush1.msra.mxu0 0.0
    %477 = vmatprep.subr.mxu0 0.0
    %478 = vmatpush1.msra.mxu0 0.0
    %479 = vmatprep.subr.mxu0 0.0
    %480 = vmatpush1.msra.mxu0 0.0
    %481 = vmatprep.subr.mxu0 0.0
    %482 = vmatpush1.msra.mxu0 0.0
    %483 = vmatprep.subr.mxu0 0.0
    %484 = vmatpush1.msra.mxu0 0.0
    %485 = vmatprep.subr.mxu0 0.0
    %486 = vmatpush1.msra.mxu0 0.0
    %487 = vmatprep.subr.mxu0 0.0
    %488 = vmatpush1.msra.mxu0 0.0
    %489 = vmatprep.subr.mxu0 0.0
    %490 = vmatpush1.msra.mxu0 0.0
    %491 = vmatprep.subr.mxu0 0.0
    %492 = vmatpush1.msra.mxu0 0.0
    %493 = vmatprep.subr.mxu0 0.0
    %494 = vmatpush1.msra.mxu0 0.0
    %495 = vmatprep.subr.mxu0 0.0
    %496 = vmatpush1.msra.mxu0 0.0
    %497 = vmatprep.subr.mxu0 0.0
    %498 = vmatpush1.msra.mxu0 0.0
    %499 = vmatprep.subr.mxu0 0.0
    %500 = vmatpush1.msra.mxu0 0.0
    %501 = vmatprep.subr.mxu0 0.0
    %502 = vmatpush1.msra.mxu0 0.0
    %503 = vmatprep.subr.mxu0 0.0
    %504 = vmatpush1.msra.mxu0 0.0
    %505 = vmatprep.subr.mxu0 0.0
    %506 = vmatpush1.msra.mxu0 0.0
    %507 = vmatprep.subr.mxu0 0.0
    %508 = vmatpush1.msra.mxu0 0.0
    %509 = vmatprep.subr.mxu0 0.0
    %510 = vmatpush1.msra.mxu0 0.0
    %511 = vmatprep.subr.mxu0 0.0
    %512 = vmatpush1.msra.mxu0 0.0
    %513 = vmatprep.subr.mxu0 0.0
    %514 = vmatpush1.msra.mxu0 0.0
    %515 = vmatprep.subr.mxu0 0.0
    %516 = vmatpush1.msra.mxu0 0.0
    %517 = vmatprep.subr.mxu0 0.0
    %518 = vmatpush1.msra.mxu0 0.0
    %519 = vmatprep.subr.mxu0 0.0
    %520 = vmatpush1.msra.mxu0 0.0
    %521 = vmatprep.subr.mxu0 0.0
    %522 = vmatpush1.msra.mxu0 0.0
    %523 = vmatprep.subr.mxu0 0.0
    %524 = vmatpush1.msra.mxu0 0.0
    %525 = vmatprep.subr.mxu0 0.0
    %526 = vmatpush1.msra.mxu0 0.0
    %527 = vmatprep.mubr.f32.mxu0 0.0
    %528 = vmatmul.mubr.f32.gmra.mrb[0].mxu0 %v321
    %v529 = vpop.f32.mrb[0].mxu0
    %v530 = vadd.f32 0.0, %v529
    %v531 = vpop.f32.mrb[0].mxu0
    %532 = vdwg.mxu0
    %533 = vmatprep.subr.mxu0 0.0
    %534 = vmatpush1.msra.mxu0 %v32
    %535 = vmatprep.subr.mxu0 0.0
    %536 = vmatpush1.msra.mxu0 %v33
    %537 = vmatprep.subr.mxu0 0.0
    %538 = vmatpush1.msra.mxu0 %v34
    %539 = vmatprep.subr.mxu0 0.0
    %540 = vmatpush1.msra.mxu0 %v35
    %541 = vmatprep.subr.mxu0 0.0
    %542 = vmatpush1.msra.mxu0 0.0
    %543 = vmatprep.subr.mxu0 0.0
    %544 = vmatpush1.msra.mxu0 0.0
    %545 = vmatprep.subr.mxu0 0.0
    %546 = vmatpush1.msra.mxu0 0.0
    %547 = vmatprep.subr.mxu0 0.0
    %548 = vmatpush1.msra.mxu0 0.0
    %549 = vmatprep.subr.mxu0 0.0
    %550 = vmatpush1.msra.mxu0 0.0
    %551 = vmatprep.subr.mxu0 0.0
    %552 = vmatpush1.msra.mxu0 0.0
    %553 = vmatprep.subr.mxu0 0.0
    %554 = vmatpush1.msra.mxu0 0.0
    %555 = vmatprep.subr.mxu0 0.0
    %556 = vmatpush1.msra.mxu0 0.0
    %557 = vmatprep.subr.mxu0 0.0
    %558 = vmatpush1.msra.mxu0 0.0
    %559 = vmatprep.subr.mxu0 0.0
    %560 = vmatpush1.msra.mxu0 0.0
    %561 = vmatprep.subr.mxu0 0.0
    %562 = vmatpush1.msra.mxu0 0.0
    %563 = vmatprep.subr.mxu0 0.0
    %564 = vmatpush1.msra.mxu0 0.0
    %565 = vmatprep.subr.mxu0 0.0
    %566 = vmatpush1.msra.mxu0 0.0
    %567 = vmatprep.subr.mxu0 0.0
    %568 = vmatpush1.msra.mxu0 0.0
    %569 = vmatprep.subr.mxu0 0.0
    %570 = vmatpush1.msra.mxu0 0.0
    %571 = vmatprep.subr.mxu0 0.0
    %572 = vmatpush1.msra.mxu0 0.0
    %573 = vmatprep.subr.mxu0 0.0
    %574 = vmatpush1.msra.mxu0 0.0
    %575 = vmatprep.subr.mxu0 0.0
    %576 = vmatpush1.msra.mxu0 0.0
    %577 = vmatprep.subr.mxu0 0.0
    %578 = vmatpush1.msra.mxu0 0.0
    %579 = vmatprep.subr.mxu0 0.0
    %580 = vmatpush1.msra.mxu0 0.0
    %581 = vmatprep.subr.mxu0 0.0
    %582 = vmatpush1.msra.mxu0 0.0
    %583 = vmatprep.subr.mxu0 0.0
    %584 = vmatpush1.msra.mxu0 0.0
    %585 = vmatprep.subr.mxu0 0.0
    %586 = vmatpush1.msra.mxu0 0.0
    %587 = vmatprep.subr.mxu0 0.0
    %588 = vmatpush1.msra.mxu0 0.0
    %589 = vmatprep.subr.mxu0 0.0
    %590 = vmatpush1.msra.mxu0 0.0
    %591 = vmatprep.subr.mxu0 0.0
    %592 = vmatpush1.msra.mxu0 0.0
    %593 = vmatprep.subr.mxu0 0.0
    %594 = vmatpush1.msra.mxu0 0.0
    %595 = vmatprep.subr.mxu0 0.0
    %596 = vmatpush1.msra.mxu0 0.0
    %597 = vmatprep.mubr.f32.mxu0 0.0
    %598 = vmatmul.mubr.f32.gmra.mrb[0].mxu0 %v321
    %v599 = vpop.f32.mrb[0].mxu0
    %v600 = vadd.f32 0.0, %v599
    %v601 = vpop.f32.mrb[0].mxu0
    %602 = vdwg.mxu0
    %v603 = vlaneseq
    %v604 = vshrl.u32 %v603, 7
    %v605 = vlaneseq
    %v606 = vand.u32 %v605, 127
    %vm607 = vcmp.le.s32.totalorder %v606, %v604
    %v608 = vsel %vm607, 0.0, -1e+30
    %610 = vrot.lane.b32.xlu0 %v107, 120
    %v611 = vpop.permute.xlu0 %610
    %vm612 = vcmask 64512
    %v613 = vsel %vm612, %v107, 0
    %v615 = vsel %vm612, %v611, 0
    %617 = vmatprep.subr.mxu0 0.0
    %618 = vmatpush1.xpose.msra.mxu0 %v615
    %619 = vmatprep.subr.mxu0 0.0
    %620 = vmatpush1.xpose.msra.mxu0 0.0
    %621 = vmatprep.subr.mxu0 0.0
    %622 = vmatpush1.xpose.msra.mxu0 0.0
    %623 = vmatprep.subr.mxu0 0.0
    %624 = vmatpush1.xpose.msra.mxu0 0.0
    %625 = vmatprep.subr.mxu0 0.0
    %626 = vmatpush1.xpose.msra.mxu0 0.0
    %627 = vmatprep.subr.mxu0 0.0
    %628 = vmatpush1.xpose.msra.mxu0 0.0
    %629 = vmatprep.subr.mxu0 0.0
    %630 = vmatpush1.xpose.msra.mxu0 0.0
    %631 = vmatprep.subr.mxu0 0.0
    %632 = vmatpush1.xpose.msra.mxu0 0.0
    %633 = vmatprep.subr.mxu0 0.0
    %634 = vmatpush1.xpose.msra.mxu0 0.0
    %635 = vmatprep.subr.mxu0 0.0
    %636 = vmatpush1.xpose.msra.mxu0 0.0
    %637 = vmatprep.subr.mxu0 0.0
    %638 = vmatpush1.xpose.msra.mxu0 0.0
    %639 = vmatprep.subr.mxu0 0.0
    %640 = vmatpush1.xpose.msra.mxu0 0.0
    %641 = vmatprep.subr.mxu0 0.0
    %642 = vmatpush1.xpose.msra.mxu0 0.0
    %643 = vmatprep.subr.mxu0 0.0
    %644 = vmatpush1.xpose.msra.mxu0 0.0
    %645 = vmatprep.subr.mxu0 0.0
    %646 = vmatpush1.xpose.msra.mxu0 0.0
    %647 = vmatprep.subr.mxu0 0.0
    %648 = vmatpush1.xpose.msra.mxu0 0.0
    %649 = vmatprep.subr.mxu0 0.0
    %650 = vmatpush1.xpose.msra.mxu0 0.0
    %651 = vmatprep.subr.mxu0 0.0
    %652 = vmatpush1.xpose.msra.mxu0 0.0
    %653 = vmatprep.subr.mxu0 0.0
    %654 = vmatpush1.xpose.msra.mxu0 0.0
    %655 = vmatprep.subr.mxu0 0.0
    %656 = vmatpush1.xpose.msra.mxu0 0.0
    %657 = vmatprep.subr.mxu0 0.0
    %658 = vmatpush1.xpose.msra.mxu0 0.0
    %659 = vmatprep.subr.mxu0 0.0
    %660 = vmatpush1.xpose.msra.mxu0 0.0
    %661 = vmatprep.subr.mxu0 0.0
    %662 = vmatpush1.xpose.msra.mxu0 0.0
    %663 = vmatprep.subr.mxu0 0.0
    %664 = vmatpush1.xpose.msra.mxu0 0.0
    %665 = vmatprep.subr.mxu0 0.0
    %666 = vmatpush1.xpose.msra.mxu0 0.0
    %667 = vmatprep.subr.mxu0 0.0
    %668 = vmatpush1.xpose.msra.mxu0 0.0
    %669 = vmatprep.subr.mxu0 0.0
    %670 = vmatpush1.xpose.msra.mxu0 0.0
    %671 = vmatprep.subr.mxu0 0.0
    %672 = vmatpush1.xpose.msra.mxu0 0.0
    %673 = vmatprep.subr.mxu0 0.0
    %674 = vmatpush1.xpose.msra.mxu0 0.0
    %675 = vmatprep.subr.mxu0 0.0
    %676 = vmatpush1.xpose.msra.mxu0 0.0
    %677 = vmatprep.subr.mxu0 0.0
    %678 = vmatpush1.xpose.msra.mxu0 0.0
    %679 = vmatprep.subr.mxu0 0.0
    %680 = vmatpush1.xpose.msra.mxu0 0.0
    %681 = vmatprep.mubr.f32.mxu0 0.0
    %682 = vmatmul.mubr.f32.gmra.mrb[0].mxu0 %v613
    %v683 = vpop.f32.mrb[0].mxu0
    %v684 = vadd.f32 %v608, %v683
    %v685 = vpop.f32.mrb[0].mxu0
    %686 = vdwg.mxu0
    %688 = vrot.lane.b32.xlu0 %v177, 120
    %v689 = vpop.permute.xlu0 %688
    %v690 = vsel %vm612, %v177, 0
    %v692 = vsel %vm612, %v689, 0
    %694 = vmatprep.subr.mxu0 0.0
    %695 = vmatpush1.xpose.msra.mxu0 %v692
    %696 = vmatprep.subr.mxu0 0.0
    %697 = vmatpush1.xpose.msra.mxu0 0.0
    %698 = vmatprep.subr.mxu0 0.0
    %699 = vmatpush1.xpose.msra.mxu0 0.0
    %700 = vmatprep.subr.mxu0 0.0
    %701 = vmatpush1.xpose.msra.mxu0 0.0
    %702 = vmatprep.subr.mxu0 0.0
    %703 = vmatpush1.xpose.msra.mxu0 0.0
    %704 = vmatprep.subr.mxu0 0.0
    %705 = vmatpush1.xpose.msra.mxu0 0.0
    %706 = vmatprep.subr.mxu0 0.0
    %707 = vmatpush1.xpose.msra.mxu0 0.0
    %708 = vmatprep.subr.mxu0 0.0
    %709 = vmatpush1.xpose.msra.mxu0 0.0
    %710 = vmatprep.subr.mxu0 0.0
    %711 = vmatpush1.xpose.msra.mxu0 0.0
    %712 = vmatprep.subr.mxu0 0.0
    %713 = vmatpush1.xpose.msra.mxu0 0.0
    %714 = vmatprep.subr.mxu0 0.0
    %715 = vmatpush1.xpose.msra.mxu0 0.0
    %716 = vmatprep.subr.mxu0 0.0
    %717 = vmatpush1.xpose.msra.mxu0 0.0
    %718 = vmatprep.subr.mxu0 0.0
    %719 = vmatpush1.xpose.msra.mxu0 0.0
    %720 = vmatprep.subr.mxu0 0.0
    %721 = vmatpush1.xpose.msra.mxu0 0.0
    %722 = vmatprep.subr.mxu0 0.0
    %723 = vmatpush1.xpose.msra.mxu0 0.0
    %724 = vmatprep.subr.mxu0 0.0
    %725 = vmatpush1.xpose.msra.mxu0 0.0
    %726 = vmatprep.subr.mxu0 0.0
    %727 = vmatpush1.xpose.msra.mxu0 0.0
    %728 = vmatprep.subr.mxu0 0.0
    %729 = vmatpush1.xpose.msra.mxu0 0.0
    %730 = vmatprep.subr.mxu0 0.0
    %731 = vmatpush1.xpose.msra.mxu0 0.0
    %732 = vmatprep.subr.mxu0 0.0
    %733 = vmatpush1.xpose.msra.mxu0 0.0
    %734 = vmatprep.subr.mxu0 0.0
    %735 = vmatpush1.xpose.msra.mxu0 0.0
    %736 = vmatprep.subr.mxu0 0.0
    %737 = vmatpush1.xpose.msra.mxu0 0.0
    %738 = vmatprep.subr.mxu0 0.0
    %739 = vmatpush1.xpose.msra.mxu0 0.0
    %740 = vmatprep.subr.mxu0 0.0
    %741 = vmatpush1.xpose.msra.mxu0 0.0
    %742 = vmatprep.subr.mxu0 0.0
    %743 = vmatpush1.xpose.msra.mxu0 0.0
    %744 = vmatprep.subr.mxu0 0.0
    %745 = vmatpush1.xpose.msra.mxu0 0.0
    %746 = vmatprep.subr.mxu0 0.0
    %747 = vmatpush1.xpose.msra.mxu0 0.0
    %748 = vmatprep.subr.mxu0 0.0
    %749 = vmatpush1.xpose.msra.mxu0 0.0
    %750 = vmatprep.subr.mxu0 0.0
    %751 = vmatpush1.xpose.msra.mxu0 0.0
    %752 = vmatprep.subr.mxu0 0.0
    %753 = vmatpush1.xpose.msra.mxu0 0.0
    %754 = vmatprep.subr.mxu0 0.0
    %755 = vmatpush1.xpose.msra.mxu0 0.0
    %756 = vmatprep.subr.mxu0 0.0
    %757 = vmatpush1.xpose.msra.mxu0 0.0
    %758 = vmatprep.mubr.f32.mxu0 0.0
    %759 = vmatmul.mubr.f32.gmra.mrb[0].mxu0 %v690
    %v760 = vpop.f32.mrb[0].mxu0
    %v761 = vadd.f32 %v608, %v760
    %v762 = vpop.f32.mrb[0].mxu0
    %763 = vdwg.mxu0
    %765 = vrot.lane.b32.xlu0 %v247, 120
    %v766 = vpop.permute.xlu0 %765
    %v767 = vsel %vm612, %v247, 0
    %v769 = vsel %vm612, %v766, 0
    %771 = vmatprep.subr.mxu0 0.0
    %772 = vmatpush1.xpose.msra.mxu0 %v769
    %773 = vmatprep.subr.mxu0 0.0
    %774 = vmatpush1.xpose.msra.mxu0 0.0
    %775 = vmatprep.subr.mxu0 0.0
    %776 = vmatpush1.xpose.msra.mxu0 0.0
    %777 = vmatprep.subr.mxu0 0.0
    %778 = vmatpush1.xpose.msra.mxu0 0.0
    %779 = vmatprep.subr.mxu0 0.0
    %780 = vmatpush1.xpose.msra.mxu0 0.0
    %781 = vmatprep.subr.mxu0 0.0
    %782 = vmatpush1.xpose.msra.mxu0 0.0
    %783 = vmatprep.subr.mxu0 0.0
    %784 = vmatpush1.xpose.msra.mxu0 0.0
    %785 = vmatprep.subr.mxu0 0.0
    %786 = vmatpush1.xpose.msra.mxu0 0.0
    %787 = vmatprep.subr.mxu0 0.0
    %788 = vmatpush1.xpose.msra.mxu0 0.0
    %789 = vmatprep.subr.mxu0 0.0
    %790 = vmatpush1.xpose.msra.mxu0 0.0
    %791 = vmatprep.subr.mxu0 0.0
    %792 = vmatpush1.xpose.msra.mxu0 0.0
    %793 = vmatprep.subr.mxu0 0.0
    %794 = vmatpush1.xpose.msra.mxu0 0.0
    %795 = vmatprep.subr.mxu0 0.0
    %796 = vmatpush1.xpose.msra.mxu0 0.0
    %797 = vmatprep.subr.mxu0 0.0
    %798 = vmatpush1.xpose.msra.mxu0 0.0
    %799 = vmatprep.subr.mxu0 0.0
    %800 = vmatpush1.xpose.msra.mxu0 0.0
    %801 = vmatprep.subr.mxu0 0.0
    %802 = vmatpush1.xpose.msra.mxu0 0.0
    %803 = vmatprep.subr.mxu0 0.0
    %804 = vmatpush1.xpose.msra.mxu0 0.0
    %805 = vmatprep.subr.mxu0 0.0
    %806 = vmatpush1.xpose.msra.mxu0 0.0
    %807 = vmatprep.subr.mxu0 0.0
    %808 = vmatpush1.xpose.msra.mxu0 0.0
    %809 = vmatprep.subr.mxu0 0.0
    %810 = vmatpush1.xpose.msra.mxu0 0.0
    %811 = vmatprep.subr.mxu0 0.0
    %812 = vmatpush1.xpose.msra.mxu0 0.0
    %813 = vmatprep.subr.mxu0 0.0
    %814 = vmatpush1.xpose.msra.mxu0 0.0
    %815 = vmatprep.subr.mxu0 0.0
    %816 = vmatpush1.xpose.msra.mxu0 0.0
    %817 = vmatprep.subr.mxu0 0.0
    %818 = vmatpush1.xpose.msra.mxu0 0.0
    %819 = vmatprep.subr.mxu0 0.0
    %820 = vmatpush1.xpose.msra.mxu0 0.0
    %821 = vmatprep.subr.mxu0 0.0
    %822 = vmatpush1.xpose.msra.mxu0 0.0
    %823 = vmatprep.subr.mxu0 0.0
    %824 = vmatpush1.xpose.msra.mxu0 0.0
    %825 = vmatprep.subr.mxu0 0.0
    %826 = vmatpush1.xpose.msra.mxu0 0.0
    %827 = vmatprep.subr.mxu0 0.0
    %828 = vmatpush1.xpose.msra.mxu0 0.0
    %829 = vmatprep.subr.mxu0 0.0
    %830 = vmatpush1.xpose.msra.mxu0 0.0
    %831 = vmatprep.subr.mxu0 0.0
    %832 = vmatpush1.xpose.msra.mxu0 0.0
    %833 = vmatprep.subr.mxu0 0.0
    %834 = vmatpush1.xpose.msra.mxu0 0.0
    %835 = vmatprep.mubr.f32.mxu0 0.0
    %836 = vmatmul.mubr.f32.gmra.mrb[0].mxu0 %v767
    %v837 = vpop.f32.mrb[0].mxu0
    %v838 = vadd.f32 %v608, %v837
    %v839 = vpop.f32.mrb[0].mxu0
    %840 = vdwg.mxu0
    %842 = vrot.lane.b32.xlu0 %v317, 120
    %v843 = vpop.permute.xlu0 %842
    %v844 = vsel %vm612, %v317, 0
    %v846 = vsel %vm612, %v843, 0
    %848 = vmatprep.subr.mxu0 0.0
    %849 = vmatpush1.xpose.msra.mxu0 %v846
    %850 = vmatprep.subr.mxu0 0.0
    %851 = vmatpush1.xpose.msra.mxu0 0.0
    %852 = vmatprep.subr.mxu0 0.0
    %853 = vmatpush1.xpose.msra.mxu0 0.0
    %854 = vmatprep.subr.mxu0 0.0
    %855 = vmatpush1.xpose.msra.mxu0 0.0
    %856 = vmatprep.subr.mxu0 0.0
    %857 = vmatpush1.xpose.msra.mxu0 0.0
    %858 = vmatprep.subr.mxu0 0.0
    %859 = vmatpush1.xpose.msra.mxu0 0.0
    %860 = vmatprep.subr.mxu0 0.0
    %861 = vmatpush1.xpose.msra.mxu0 0.0
    %862 = vmatprep.subr.mxu0 0.0
    %863 = vmatpush1.xpose.msra.mxu0 0.0
    %864 = vmatprep.subr.mxu0 0.0
    %865 = vmatpush1.xpose.msra.mxu0 0.0
    %866 = vmatprep.subr.mxu0 0.0
    %867 = vmatpush1.xpose.msra.mxu0 0.0
    %868 = vmatprep.subr.mxu0 0.0
    %869 = vmatpush1.xpose.msra.mxu0 0.0
    %870 = vmatprep.subr.mxu0 0.0
    %871 = vmatpush1.xpose.msra.mxu0 0.0
    %872 = vmatprep.subr.mxu0 0.0
    %873 = vmatpush1.xpose.msra.mxu0 0.0
    %874 = vmatprep.subr.mxu0 0.0
    %875 = vmatpush1.xpose.msra.mxu0 0.0
    %876 = vmatprep.subr.mxu0 0.0
    %877 = vmatpush1.xpose.msra.mxu0 0.0
    %878 = vmatprep.subr.mxu0 0.0
    %879 = vmatpush1.xpose.msra.mxu0 0.0
    %880 = vmatprep.subr.mxu0 0.0
    %881 = vmatpush1.xpose.msra.mxu0 0.0
    %882 = vmatprep.subr.mxu0 0.0
    %883 = vmatpush1.xpose.msra.mxu0 0.0
    %884 = vmatprep.subr.mxu0 0.0
    %885 = vmatpush1.xpose.msra.mxu0 0.0
    %886 = vmatprep.subr.mxu0 0.0
    %887 = vmatpush1.xpose.msra.mxu0 0.0
    %888 = vmatprep.subr.mxu0 0.0
    %889 = vmatpush1.xpose.msra.mxu0 0.0
    %890 = vmatprep.subr.mxu0 0.0
    %891 = vmatpush1.xpose.msra.mxu0 0.0
    %892 = vmatprep.subr.mxu0 0.0
    %893 = vmatpush1.xpose.msra.mxu0 0.0
    %894 = vmatprep.subr.mxu0 0.0
    %895 = vmatpush1.xpose.msra.mxu0 0.0
    %896 = vmatprep.subr.mxu0 0.0
    %897 = vmatpush1.xpose.msra.mxu0 0.0
    %898 = vmatprep.subr.mxu0 0.0
    %899 = vmatpush1.xpose.msra.mxu0 0.0
    %900 = vmatprep.subr.mxu0 0.0
    %901 = vmatpush1.xpose.msra.mxu0 0.0
    %902 = vmatprep.subr.mxu0 0.0
    %903 = vmatpush1.xpose.msra.mxu0 0.0
    %904 = vmatprep.subr.mxu0 0.0
    %905 = vmatpush1.xpose.msra.mxu0 0.0
    %906 = vmatprep.subr.mxu0 0.0
    %907 = vmatpush1.xpose.msra.mxu0 0.0
    %908 = vmatprep.subr.mxu0 0.0
    %909 = vmatpush1.xpose.msra.mxu0 0.0
    %910 = vmatprep.subr.mxu0 0.0
    %911 = vmatpush1.xpose.msra.mxu0 0.0
    %912 = vmatprep.mubr.f32.mxu0 0.0
    %913 = vmatmul.mubr.f32.gmra.mrb[0].mxu0 %v844
    %v914 = vpop.f32.mrb[0].mxu0
    %v915 = vadd.f32 %v608, %v914
    %v916 = vpop.f32.mrb[0].mxu0
    %917 = vdwg.mxu0
    %919 = vrot.lane.b32.xlu0 %v390, 120
    %v920 = vpop.permute.xlu0 %919
    %v921 = vsel %vm612, %v390, 0
    %v923 = vsel %vm612, %v920, 0
    %925 = vmatprep.subr.mxu0 0.0
    %926 = vmatpush1.xpose.msra.mxu0 %v923
    %927 = vmatprep.subr.mxu0 0.0
    %928 = vmatpush1.xpose.msra.mxu0 0.0
    %929 = vmatprep.subr.mxu0 0.0
    %930 = vmatpush1.xpose.msra.mxu0 0.0
    %931 = vmatprep.subr.mxu0 0.0
    %932 = vmatpush1.xpose.msra.mxu0 0.0
    %933 = vmatprep.subr.mxu0 0.0
    %934 = vmatpush1.xpose.msra.mxu0 0.0
    %935 = vmatprep.subr.mxu0 0.0
    %936 = vmatpush1.xpose.msra.mxu0 0.0
    %937 = vmatprep.subr.mxu0 0.0
    %938 = vmatpush1.xpose.msra.mxu0 0.0
    %939 = vmatprep.subr.mxu0 0.0
    %940 = vmatpush1.xpose.msra.mxu0 0.0
    %941 = vmatprep.subr.mxu0 0.0
    %942 = vmatpush1.xpose.msra.mxu0 0.0
    %943 = vmatprep.subr.mxu0 0.0
    %944 = vmatpush1.xpose.msra.mxu0 0.0
    %945 = vmatprep.subr.mxu0 0.0
    %946 = vmatpush1.xpose.msra.mxu0 0.0
    %947 = vmatprep.subr.mxu0 0.0
    %948 = vmatpush1.xpose.msra.mxu0 0.0
    %949 = vmatprep.subr.mxu0 0.0
    %950 = vmatpush1.xpose.msra.mxu0 0.0
    %951 = vmatprep.subr.mxu0 0.0
    %952 = vmatpush1.xpose.msra.mxu0 0.0
    %953 = vmatprep.subr.mxu0 0.0
    %954 = vmatpush1.xpose.msra.mxu0 0.0
    %955 = vmatprep.subr.mxu0 0.0
    %956 = vmatpush1.xpose.msra.mxu0 0.0
    %957 = vmatprep.subr.mxu0 0.0
    %958 = vmatpush1.xpose.msra.mxu0 0.0
    %959 = vmatprep.subr.mxu0 0.0
    %960 = vmatpush1.xpose.msra.mxu0 0.0
    %961 = vmatprep.subr.mxu0 0.0
    %962 = vmatpush1.xpose.msra.mxu0 0.0
    %963 = vmatprep.subr.mxu0 0.0
    %964 = vmatpush1.xpose.msra.mxu0 0.0
    %965 = vmatprep.subr.mxu0 0.0
    %966 = vmatpush1.xpose.msra.mxu0 0.0
    %967 = vmatprep.subr.mxu0 0.0
    %968 = vmatpush1.xpose.msra.mxu0 0.0
    %969 = vmatprep.subr.mxu0 0.0
    %970 = vmatpush1.xpose.msra.mxu0 0.0
    %971 = vmatprep.subr.mxu0 0.0
    %972 = vmatpush1.xpose.msra.mxu0 0.0
    %973 = vmatprep.subr.mxu0 0.0
    %974 = vmatpush1.xpose.msra.mxu0 0.0
    %975 = vmatprep.subr.mxu0 0.0
    %976 = vmatpush1.xpose.msra.mxu0 0.0
    %977 = vmatprep.subr.mxu0 0.0
    %978 = vmatpush1.xpose.msra.mxu0 0.0
    %979 = vmatprep.subr.mxu0 0.0
    %980 = vmatpush1.xpose.msra.mxu0 0.0
    %981 = vmatprep.subr.mxu0 0.0
    %982 = vmatpush1.xpose.msra.mxu0 0.0
    %983 = vmatprep.subr.mxu0 0.0
    %984 = vmatpush1.xpose.msra.mxu0 0.0
    %985 = vmatprep.subr.mxu0 0.0
    %986 = vmatpush1.xpose.msra.mxu0 0.0
    %987 = vmatprep.subr.mxu0 0.0
    %988 = vmatpush1.xpose.msra.mxu0 0.0
    %989 = vmatprep.mubr.f32.mxu0 0.0
    %990 = vmatmul.mubr.f32.gmra.mrb[0].mxu0 %v921
    %v991 = vpop.f32.mrb[0].mxu0
    %v992 = vadd.f32 %v608, %v991
    %v993 = vpop.f32.mrb[0].mxu0
    %994 = vdwg.mxu0
    %996 = vrot.lane.b32.xlu0 %v460, 120
    %v997 = vpop.permute.xlu0 %996
    %v998 = vsel %vm612, %v460, 0
    %v1000 = vsel %vm612, %v997, 0
    %1002 = vmatprep.subr.mxu0 0.0
    %1003 = vmatpush1.xpose.msra.mxu0 %v1000
    %1004 = vmatprep.subr.mxu0 0.0
    %1005 = vmatpush1.xpose.msra.mxu0 0.0
    %1006 = vmatprep.subr.mxu0 0.0
    %1007 = vmatpush1.xpose.msra.mxu0 0.0
    %1008 = vmatprep.subr.mxu0 0.0
    %1009 = vmatpush1.xpose.msra.mxu0 0.0
    %1010 = vmatprep.subr.mxu0 0.0
    %1011 = vmatpush1.xpose.msra.mxu0 0.0
    %1012 = vmatprep.subr.mxu0 0.0
    %1013 = vmatpush1.xpose.msra.mxu0 0.0
    %1014 = vmatprep.subr.mxu0 0.0
    %1015 = vmatpush1.xpose.msra.mxu0 0.0
    %1016 = vmatprep.subr.mxu0 0.0
    %1017 = vmatpush1.xpose.msra.mxu0 0.0
    %1018 = vmatprep.subr.mxu0 0.0
    %1019 = vmatpush1.xpose.msra.mxu0 0.0
    %1020 = vmatprep.subr.mxu0 0.0
    %1021 = vmatpush1.xpose.msra.mxu0 0.0
    %1022 = vmatprep.subr.mxu0 0.0
    %1023 = vmatpush1.xpose.msra.mxu0 0.0
    %1024 = vmatprep.subr.mxu0 0.0
    %1025 = vmatpush1.xpose.msra.mxu0 0.0
    %1026 = vmatprep.subr.mxu0 0.0
    %1027 = vmatpush1.xpose.msra.mxu0 0.0
    %1028 = vmatprep.subr.mxu0 0.0
    %1029 = vmatpush1.xpose.msra.mxu0 0.0
    %1030 = vmatprep.subr.mxu0 0.0
    %1031 = vmatpush1.xpose.msra.mxu0 0.0
    %1032 = vmatprep.subr.mxu0 0.0
    %1033 = vmatpush1.xpose.msra.mxu0 0.0
    %1034 = vmatprep.subr.mxu0 0.0
    %1035 = vmatpush1.xpose.msra.mxu0 0.0
    %1036 = vmatprep.subr.mxu0 0.0
    %1037 = vmatpush1.xpose.msra.mxu0 0.0
    %1038 = vmatprep.subr.mxu0 0.0
    %1039 = vmatpush1.xpose.msra.mxu0 0.0
    %1040 = vmatprep.subr.mxu0 0.0
    %1041 = vmatpush1.xpose.msra.mxu0 0.0
    %1042 = vmatprep.subr.mxu0 0.0
    %1043 = vmatpush1.xpose.msra.mxu0 0.0
    %1044 = vmatprep.subr.mxu0 0.0
    %1045 = vmatpush1.xpose.msra.mxu0 0.0
    %1046 = vmatprep.subr.mxu0 0.0
    %1047 = vmatpush1.xpose.msra.mxu0 0.0
    %1048 = vmatprep.subr.mxu0 0.0
    %1049 = vmatpush1.xpose.msra.mxu0 0.0
    %1050 = vmatprep.subr.mxu0 0.0
    %1051 = vmatpush1.xpose.msra.mxu0 0.0
    %1052 = vmatprep.subr.mxu0 0.0
    %1053 = vmatpush1.xpose.msra.mxu0 0.0
    %1054 = vmatprep.subr.mxu0 0.0
    %1055 = vmatpush1.xpose.msra.mxu0 0.0
    %1056 = vmatprep.subr.mxu0 0.0
    %1057 = vmatpush1.xpose.msra.mxu0 0.0
    %1058 = vmatprep.subr.mxu0 0.0
    %1059 = vmatpush1.xpose.msra.mxu0 0.0
    %1060 = vmatprep.subr.mxu0 0.0
    %1061 = vmatpush1.xpose.msra.mxu0 0.0
    %1062 = vmatprep.subr.mxu0 0.0
    %1063 = vmatpush1.xpose.msra.mxu0 0.0
    %1064 = vmatprep.subr.mxu0 0.0
    %1065 = vmatpush1.xpose.msra.mxu0 0.0
    %1066 = vmatprep.mubr.f32.mxu0 0.0
    %1067 = vmatmul.mubr.f32.gmra.mrb[0].mxu0 %v998
    %v1068 = vpop.f32.mrb[0].mxu0
    %v1069 = vadd.f32 %v608, %v1068
    %v1070 = vpop.f32.mrb[0].mxu0
    %1071 = vdwg.mxu0
    %1073 = vrot.lane.b32.xlu0 %v530, 120
    %v1074 = vpop.permute.xlu0 %1073
    %v1075 = vsel %vm612, %v530, 0
    %v1077 = vsel %vm612, %v1074, 0
    %1079 = vmatprep.subr.mxu0 0.0
    %1080 = vmatpush1.xpose.msra.mxu0 %v1077
    %1081 = vmatprep.subr.mxu0 0.0
    %1082 = vmatpush1.xpose.msra.mxu0 0.0
    %1083 = vmatprep.subr.mxu0 0.0
    %1084 = vmatpush1.xpose.msra.mxu0 0.0
    %1085 = vmatprep.subr.mxu0 0.0
    %1086 = vmatpush1.xpose.msra.mxu0 0.0
    %1087 = vmatprep.subr.mxu0 0.0
    %1088 = vmatpush1.xpose.msra.mxu0 0.0
    %1089 = vmatprep.subr.mxu0 0.0
    %1090 = vmatpush1.xpose.msra.mxu0 0.0
    %1091 = vmatprep.subr.mxu0 0.0
    %1092 = vmatpush1.xpose.msra.mxu0 0.0
    %1093 = vmatprep.subr.mxu0 0.0
    %1094 = vmatpush1.xpose.msra.mxu0 0.0
    %1095 = vmatprep.subr.mxu0 0.0
    %1096 = vmatpush1.xpose.msra.mxu0 0.0
    %1097 = vmatprep.subr.mxu0 0.0
    %1098 = vmatpush1.xpose.msra.mxu0 0.0
    %1099 = vmatprep.subr.mxu0 0.0
    %1100 = vmatpush1.xpose.msra.mxu0 0.0
    %1101 = vmatprep.subr.mxu0 0.0
    %1102 = vmatpush1.xpose.msra.mxu0 0.0
    %1103 = vmatprep.subr.mxu0 0.0
    %1104 = vmatpush1.xpose.msra.mxu0 0.0
    %1105 = vmatprep.subr.mxu0 0.0
    %1106 = vmatpush1.xpose.msra.mxu0 0.0
    %1107 = vmatprep.subr.mxu0 0.0
    %1108 = vmatpush1.xpose.msra.mxu0 0.0
    %1109 = vmatprep.subr.mxu0 0.0
    %1110 = vmatpush1.xpose.msra.mxu0 0.0
    %1111 = vmatprep.subr.mxu0 0.0
    %1112 = vmatpush1.xpose.msra.mxu0 0.0
    %1113 = vmatprep.subr.mxu0 0.0
    %1114 = vmatpush1.xpose.msra.mxu0 0.0
    %1115 = vmatprep.subr.mxu0 0.0
    %1116 = vmatpush1.xpose.msra.mxu0 0.0
    %1117 = vmatprep.subr.mxu0 0.0
    %1118 = vmatpush1.xpose.msra.mxu0 0.0
    %1119 = vmatprep.subr.mxu0 0.0
    %1120 = vmatpush1.xpose.msra.mxu0 0.0
    %1121 = vmatprep.subr.mxu0 0.0
    %1122 = vmatpush1.xpose.msra.mxu0 0.0
    %1123 = vmatprep.subr.mxu0 0.0
    %1124 = vmatpush1.xpose.msra.mxu0 0.0
    %1125 = vmatprep.subr.mxu0 0.0
    %1126 = vmatpush1.xpose.msra.mxu0 0.0
    %1127 = vmatprep.subr.mxu0 0.0
    %1128 = vmatpush1.xpose.msra.mxu0 0.0
    %1129 = vmatprep.subr.mxu0 0.0
    %1130 = vmatpush1.xpose.msra.mxu0 0.0
    %1131 = vmatprep.subr.mxu0 0.0
    %1132 = vmatpush1.xpose.msra.mxu0 0.0
    %1133 = vmatprep.subr.mxu0 0.0
    %1134 = vmatpush1.xpose.msra.mxu0 0.0
    %1135 = vmatprep.subr.mxu0 0.0
    %1136 = vmatpush1.xpose.msra.mxu0 0.0
    %1137 = vmatprep.subr.mxu0 0.0
    %1138 = vmatpush1.xpose.msra.mxu0 0.0
    %1139 = vmatprep.subr.mxu0 0.0
    %1140 = vmatpush1.xpose.msra.mxu0 0.0
    %1141 = vmatprep.subr.mxu0 0.0
    %1142 = vmatpush1.xpose.msra.mxu0 0.0
    %1143 = vmatprep.mubr.f32.mxu0 0.0
    %1144 = vmatmul.mubr.f32.gmra.mrb[0].mxu0 %v1075
    %v1145 = vpop.f32.mrb[0].mxu0
    %v1146 = vadd.f32 %v608, %v1145
    %v1147 = vpop.f32.mrb[0].mxu0
    %1148 = vdwg.mxu0
    %1150 = vrot.lane.b32.xlu0 %v600, 120
    %v1151 = vpop.permute.xlu0 %1150
    %v1152 = vsel %vm612, %v600, 0
    %v1154 = vsel %vm612, %v1151, 0
    %1156 = vmatprep.subr.mxu0 0.0
    %1157 = vmatpush1.xpose.msra.mxu0 %v1154
    %1158 = vmatprep.subr.mxu0 0.0
    %1159 = vmatpush1.xpose.msra.mxu0 0.0
    %1160 = vmatprep.subr.mxu0 0.0
    %1161 = vmatpush1.xpose.msra.mxu0 0.0
    %1162 = vmatprep.subr.mxu0 0.0
    %1163 = vmatpush1.xpose.msra.mxu0 0.0
    %1164 = vmatprep.subr.mxu0 0.0
    %1165 = vmatpush1.xpose.msra.mxu0 0.0
    %1166 = vmatprep.subr.mxu0 0.0
    %1167 = vmatpush1.xpose.msra.mxu0 0.0
    %1168 = vmatprep.subr.mxu0 0.0
    %1169 = vmatpush1.xpose.msra.mxu0 0.0
    %1170 = vmatprep.subr.mxu0 0.0
    %1171 = vmatpush1.xpose.msra.mxu0 0.0
    %1172 = vmatprep.subr.mxu0 0.0
    %1173 = vmatpush1.xpose.msra.mxu0 0.0
    %1174 = vmatprep.subr.mxu0 0.0
    %1175 = vmatpush1.xpose.msra.mxu0 0.0
    %1176 = vmatprep.subr.mxu0 0.0
    %1177 = vmatpush1.xpose.msra.mxu0 0.0
    %1178 = vmatprep.subr.mxu0 0.0
    %1179 = vmatpush1.xpose.msra.mxu0 0.0
    %1180 = vmatprep.subr.mxu0 0.0
    %1181 = vmatpush1.xpose.msra.mxu0 0.0
    %1182 = vmatprep.subr.mxu0 0.0
    %1183 = vmatpush1.xpose.msra.mxu0 0.0
    %1184 = vmatprep.subr.mxu0 0.0
    %1185 = vmatpush1.xpose.msra.mxu0 0.0
    %1186 = vmatprep.subr.mxu0 0.0
    %1187 = vmatpush1.xpose.msra.mxu0 0.0
    %1188 = vmatprep.subr.mxu0 0.0
    %1189 = vmatpush1.xpose.msra.mxu0 0.0
    %1190 = vmatprep.subr.mxu0 0.0
    %1191 = vmatpush1.xpose.msra.mxu0 0.0
    %1192 = vmatprep.subr.mxu0 0.0
    %1193 = vmatpush1.xpose.msra.mxu0 0.0
    %1194 = vmatprep.subr.mxu0 0.0
    %1195 = vmatpush1.xpose.msra.mxu0 0.0
    %1196 = vmatprep.subr.mxu0 0.0
    %1197 = vmatpush1.xpose.msra.mxu0 0.0
    %1198 = vmatprep.subr.mxu0 0.0
    %1199 = vmatpush1.xpose.msra.mxu0 0.0
    %1200 = vmatprep.subr.mxu0 0.0
    %1201 = vmatpush1.xpose.msra.mxu0 0.0
    %1202 = vmatprep.subr.mxu0 0.0
    %1203 = vmatpush1.xpose.msra.mxu0 0.0
    %1204 = vmatprep.subr.mxu0 0.0
    %1205 = vmatpush1.xpose.msra.mxu0 0.0
    %1206 = vmatprep.subr.mxu0 0.0
    %1207 = vmatpush1.xpose.msra.mxu0 0.0
    %1208 = vmatprep.subr.mxu0 0.0
    %1209 = vmatpush1.xpose.msra.mxu0 0.0
    %1210 = vmatprep.subr.mxu0 0.0
    %1211 = vmatpush1.xpose.msra.mxu0 0.0
    %1212 = vmatprep.subr.mxu0 0.0
    %1213 = vmatpush1.xpose.msra.mxu0 0.0
    %1214 = vmatprep.subr.mxu0 0.0
    %1215 = vmatpush1.xpose.msra.mxu0 0.0
    %1216 = vmatprep.subr.mxu0 0.0
    %1217 = vmatpush1.xpose.msra.mxu0 0.0
    %1218 = vmatprep.subr.mxu0 0.0
    %1219 = vmatpush1.xpose.msra.mxu0 0.0
    %1220 = vmatprep.mubr.f32.mxu0 0.0
    %1221 = vmatmul.mubr.f32.gmra.mrb[0].mxu0 %v1152
    %v1222 = vpop.f32.mrb[0].mxu0
    %v1223 = vadd.f32 %v608, %v1222
    %v1224 = vpop.f32.mrb[0].mxu0
    %1225 = vdwg.mxu0
    %v1226 = vsel %vm612, %v684, -inf
    %1227 = vmax.xlane.f32.xlu0 %v1226
    %v1228 = vpop.xlane.xlu0 %1227
    %v1229 = vsel %vm612, %v761, -inf
    %1230 = vmax.xlane.f32.xlu0 %v1229
    %v1231 = vpop.xlane.xlu0 %1230
    %v1232 = vsel %vm612, %v838, -inf
    %1233 = vmax.xlane.f32.xlu0 %v1232
    %v1234 = vpop.xlane.xlu0 %1233
    %v1235 = vsel %vm612, %v915, -inf
    %1236 = vmax.xlane.f32.xlu0 %v1235
    %v1237 = vpop.xlane.xlu0 %1236
    %v1238 = vsel %vm612, %v992, -inf
    %1239 = vmax.xlane.f32.xlu0 %v1238
    %v1240 = vpop.xlane.xlu0 %1239
    %v1241 = vsel %vm612, %v1069, -inf
    %1242 = vmax.xlane.f32.xlu0 %v1241
    %v1243 = vpop.xlane.xlu0 %1242
    %v1244 = vsel %vm612, %v1146, -inf
    %1245 = vmax.xlane.f32.xlu0 %v1244
    %v1246 = vpop.xlane.xlu0 %1245
    %v1247 = vsel %vm612, %v1223, -inf
    %1248 = vmax.xlane.f32.xlu0 %v1247
    %v1249 = vpop.xlane.xlu0 %1248
    %v1250 = vsub.f32 %v684, %v1228
    %v1251 = vsub.f32 %v761, %v1231
    %v1252 = vsub.f32 %v838, %v1234
    %v1253 = vsub.f32 %v915, %v1237
    %v1254 = vsub.f32 %v992, %v1240
    %v1255 = vsub.f32 %v1069, %v1243
    %v1256 = vsub.f32 %v1146, %v1246
    %v1257 = vsub.f32 %v1223, %v1249
    %v1258 = vmul.f32 %v1250, 1.442695
    %v1259 = vpow.pop %v1258
    %v1260 = vmul.f32 %v1251, 1.442695
    %v1261 = vpow.pop %v1260
    %v1262 = vmul.f32 %v1252, 1.442695
    %v1263 = vpow.pop %v1262
    %v1264 = vmul.f32 %v1253, 1.442695
    %v1265 = vpow.pop %v1264
    %v1266 = vmul.f32 %v1254, 1.442695
    %v1267 = vpow.pop %v1266
    %v1268 = vmul.f32 %v1255, 1.442695
    %v1269 = vpow.pop %v1268
    %v1270 = vmul.f32 %v1256, 1.442695
    %v1271 = vpow.pop %v1270
    %v1272 = vmul.f32 %v1257, 1.442695
    %v1273 = vpow.pop %v1272
    %v1274 = vsel %vm612, %v1259, 0.0
    %1275 = vadd.xlane.f32.xlu0 %v1274
    %v1276 = vpop.xlane.xlu0 %1275
    %v1277 = vsel %vm612, %v1261, 0.0
    %1278 = vadd.xlane.f32.xlu0 %v1277
    %v1279 = vpop.xlane.xlu0 %1278
    %v1280 = vsel %vm612, %v1263, 0.0
    %1281 = vadd.xlane.f32.xlu0 %v1280
    %v1282 = vpop.xlane.xlu0 %1281
    %v1283 = vsel %vm612, %v1265, 0.0
    %1284 = vadd.xlane.f32.xlu0 %v1283
    %v1285 = vpop.xlane.xlu0 %1284
    %v1286 = vsel %vm612, %v1267, 0.0
    %1287 = vadd.xlane.f32.xlu0 %v1286
    %v1288 = vpop.xlane.xlu0 %1287
    %v1289 = vsel %vm612, %v1269, 0.0
    %1290 = vadd.xlane.f32.xlu0 %v1289
    %v1291 = vpop.xlane.xlu0 %1290
    %v1292 = vsel %vm612, %v1271, 0.0
    %1293 = vadd.xlane.f32.xlu0 %v1292
    %v1294 = vpop.xlane.xlu0 %1293
    %v1295 = vsel %vm612, %v1273, 0.0
    %1296 = vadd.xlane.f32.xlu0 %v1295
    %v1297 = vpop.xlane.xlu0 %1296
    %v1298 = vrcp.pop %v1276
    %v1299 = vrcp.pop %v1279
    %v1300 = vrcp.pop %v1282
    %v1301 = vrcp.pop %v1285
    %v1302 = vrcp.pop %v1288
    %v1303 = vrcp.pop %v1291
    %v1304 = vrcp.pop %v1294
    %v1305 = vrcp.pop %v1297
    %v1306 = vmul.f32 %v1259, %v1298
    %v1307 = vmul.f32 %v1261, %v1299
    %v1308 = vmul.f32 %v1263, %v1300
    %v1309 = vmul.f32 %v1265, %v1301
    %v1310 = vmul.f32 %v1267, %v1302
    %v1311 = vmul.f32 %v1269, %v1303
    %v1312 = vmul.f32 %v1271, %v1304
    %v1313 = vmul.f32 %v1273, %v1305
    %1314 = vrot.lane.b32.xlu0 %v107, 112
    %v1315 = vpop.permute.xlu0 %1314
    %v1318 = vsel %vm612, %v1306, 0
    %1320 = vmatprep.subr.mxu0 0.0
    %1321 = vmatpush1.msra.mxu0 %v1315
    %1322 = vmatprep.subr.mxu0 0.0
    %1323 = vmatpush1.msra.mxu0 0.0
    %1324 = vmatprep.subr.mxu0 0.0
    %1325 = vmatpush1.msra.mxu0 0.0
    %1326 = vmatprep.subr.mxu0 0.0
    %1327 = vmatpush1.msra.mxu0 0.0
    %1328 = vmatprep.subr.mxu0 0.0
    %1329 = vmatpush1.msra.mxu0 0.0
    %1330 = vmatprep.subr.mxu0 0.0
    %1331 = vmatpush1.msra.mxu0 0.0
    %1332 = vmatprep.subr.mxu0 0.0
    %1333 = vmatpush1.msra.mxu0 0.0
    %1334 = vmatprep.subr.mxu0 0.0
    %1335 = vmatpush1.msra.mxu0 0.0
    %1336 = vmatprep.subr.mxu0 0.0
    %1337 = vmatpush1.msra.mxu0 0.0
    %1338 = vmatprep.subr.mxu0 0.0
    %1339 = vmatpush1.msra.mxu0 0.0
    %1340 = vmatprep.subr.mxu0 0.0
    %1341 = vmatpush1.msra.mxu0 0.0
    %1342 = vmatprep.subr.mxu0 0.0
    %1343 = vmatpush1.msra.mxu0 0.0
    %1344 = vmatprep.subr.mxu0 0.0
    %1345 = vmatpush1.msra.mxu0 0.0
    %1346 = vmatprep.subr.mxu0 0.0
    %1347 = vmatpush1.msra.mxu0 0.0
    %1348 = vmatprep.subr.mxu0 0.0
    %1349 = vmatpush1.msra.mxu0 0.0
    %1350 = vmatprep.subr.mxu0 0.0
    %1351 = vmatpush1.msra.mxu0 0.0
    %1352 = vmatprep.subr.mxu0 0.0
    %1353 = vmatpush1.msra.mxu0 0.0
    %1354 = vmatprep.subr.mxu0 0.0
    %1355 = vmatpush1.msra.mxu0 0.0
    %1356 = vmatprep.subr.mxu0 0.0
    %1357 = vmatpush1.msra.mxu0 0.0
    %1358 = vmatprep.subr.mxu0 0.0
    %1359 = vmatpush1.msra.mxu0 0.0
    %1360 = vmatprep.subr.mxu0 0.0
    %1361 = vmatpush1.msra.mxu0 0.0
    %1362 = vmatprep.subr.mxu0 0.0
    %1363 = vmatpush1.msra.mxu0 0.0
    %1364 = vmatprep.subr.mxu0 0.0
    %1365 = vmatpush1.msra.mxu0 0.0
    %1366 = vmatprep.subr.mxu0 0.0
    %1367 = vmatpush1.msra.mxu0 0.0
    %1368 = vmatprep.subr.mxu0 0.0
    %1369 = vmatpush1.msra.mxu0 0.0
    %1370 = vmatprep.subr.mxu0 0.0
    %1371 = vmatpush1.msra.mxu0 0.0
    %1372 = vmatprep.subr.mxu0 0.0
    %1373 = vmatpush1.msra.mxu0 0.0
    %1374 = vmatprep.subr.mxu0 0.0
    %1375 = vmatpush1.msra.mxu0 0.0
    %1376 = vmatprep.subr.mxu0 0.0
    %1377 = vmatpush1.msra.mxu0 0.0
    %1378 = vmatprep.subr.mxu0 0.0
    %1379 = vmatpush1.msra.mxu0 0.0
    %1380 = vmatprep.subr.mxu0 0.0
    %1381 = vmatpush1.msra.mxu0 0.0
    %1382 = vmatprep.subr.mxu0 0.0
    %1383 = vmatpush1.msra.mxu0 0.0
    %1384 = vmatprep.mubr.f32.mxu0 0.0
    %1385 = vmatmul.mubr.f32.gmra.mrb[0].mxu0 %v1318
    %v1386 = vpop.f32.mrb[0].mxu0
    %v1387 = vadd.f32 0.0, %v1386
    %v1388 = vpop.f32.mrb[0].mxu0
    %1389 = vdwg.mxu0
    %1390 = vrot.lane.b32.xlu0 %v177, 112
    %v1391 = vpop.permute.xlu0 %1390
    %v1394 = vsel %vm612, %v1307, 0
    %1396 = vmatprep.subr.mxu0 0.0
    %1397 = vmatpush1.msra.mxu0 %v1391
    %1398 = vmatprep.subr.mxu0 0.0
    %1399 = vmatpush1.msra.mxu0 0.0
    %1400 = vmatprep.subr.mxu0 0.0
    %1401 = vmatpush1.msra.mxu0 0.0
    %1402 = vmatprep.subr.mxu0 0.0
    %1403 = vmatpush1.msra.mxu0 0.0
    %1404 = vmatprep.subr.mxu0 0.0
    %1405 = vmatpush1.msra.mxu0 0.0
    %1406 = vmatprep.subr.mxu0 0.0
    %1407 = vmatpush1.msra.mxu0 0.0
    %1408 = vmatprep.subr.mxu0 0.0
    %1409 = vmatpush1.msra.mxu0 0.0
    %1410 = vmatprep.subr.mxu0 0.0
    %1411 = vmatpush1.msra.mxu0 0.0
    %1412 = vmatprep.subr.mxu0 0.0
    %1413 = vmatpush1.msra.mxu0 0.0
    %1414 = vmatprep.subr.mxu0 0.0
    %1415 = vmatpush1.msra.mxu0 0.0
    %1416 = vmatprep.subr.mxu0 0.0
    %1417 = vmatpush1.msra.mxu0 0.0
    %1418 = vmatprep.subr.mxu0 0.0
    %1419 = vmatpush1.msra.mxu0 0.0
    %1420 = vmatprep.subr.mxu0 0.0
    %1421 = vmatpush1.msra.mxu0 0.0
    %1422 = vmatprep.subr.mxu0 0.0
    %1423 = vmatpush1.msra.mxu0 0.0
    %1424 = vmatprep.subr.mxu0 0.0
    %1425 = vmatpush1.msra.mxu0 0.0
    %1426 = vmatprep.subr.mxu0 0.0
    %1427 = vmatpush1.msra.mxu0 0.0
    %1428 = vmatprep.subr.mxu0 0.0
    %1429 = vmatpush1.msra.mxu0 0.0
    %1430 = vmatprep.subr.mxu0 0.0
    %1431 = vmatpush1.msra.mxu0 0.0
    %1432 = vmatprep.subr.mxu0 0.0
    %1433 = vmatpush1.msra.mxu0 0.0
    %1434 = vmatprep.subr.mxu0 0.0
    %1435 = vmatpush1.msra.mxu0 0.0
    %1436 = vmatprep.subr.mxu0 0.0
    %1437 = vmatpush1.msra.mxu0 0.0
    %1438 = vmatprep.subr.mxu0 0.0
    %1439 = vmatpush1.msra.mxu0 0.0
    %1440 = vmatprep.subr.mxu0 0.0
    %1441 = vmatpush1.msra.mxu0 0.0
    %1442 = vmatprep.subr.mxu0 0.0
    %1443 = vmatpush1.msra.mxu0 0.0
    %1444 = vmatprep.subr.mxu0 0.0
    %1445 = vmatpush1.msra.mxu0 0.0
    %1446 = vmatprep.subr.mxu0 0.0
    %1447 = vmatpush1.msra.mxu0 0.0
    %1448 = vmatprep.subr.mxu0 0.0
    %1449 = vmatpush1.msra.mxu0 0.0
    %1450 = vmatprep.subr.mxu0 0.0
    %1451 = vmatpush1.msra.mxu0 0.0
    %1452 = vmatprep.subr.mxu0 0.0
    %1453 = vmatpush1.msra.mxu0 0.0
    %1454 = vmatprep.subr.mxu0 0.0
    %1455 = vmatpush1.msra.mxu0 0.0
    %1456 = vmatprep.subr.mxu0 0.0
    %1457 = vmatpush1.msra.mxu0 0.0
    %1458 = vmatprep.subr.mxu0 0.0
    %1459 = vmatpush1.msra.mxu0 0.0
    %1460 = vmatprep.mubr.f32.mxu0 0.0
    %1461 = vmatmul.mubr.f32.gmra.mrb[0].mxu0 %v1394
    %v1462 = vpop.f32.mrb[0].mxu0
    %v1463 = vadd.f32 0.0, %v1462
    %v1464 = vpop.f32.mrb[0].mxu0
    %1465 = vdwg.mxu0
    %1466 = vrot.lane.b32.xlu0 %v247, 112
    %v1467 = vpop.permute.xlu0 %1466
    %v1470 = vsel %vm612, %v1308, 0
    %1472 = vmatprep.subr.mxu0 0.0
    %1473 = vmatpush1.msra.mxu0 %v1467
    %1474 = vmatprep.subr.mxu0 0.0
    %1475 = vmatpush1.msra.mxu0 0.0
    %1476 = vmatprep.subr.mxu0 0.0
    %1477 = vmatpush1.msra.mxu0 0.0
    %1478 = vmatprep.subr.mxu0 0.0
    %1479 = vmatpush1.msra.mxu0 0.0
    %1480 = vmatprep.subr.mxu0 0.0
    %1481 = vmatpush1.msra.mxu0 0.0
    %1482 = vmatprep.subr.mxu0 0.0
    %1483 = vmatpush1.msra.mxu0 0.0
    %1484 = vmatprep.subr.mxu0 0.0
    %1485 = vmatpush1.msra.mxu0 0.0
    %1486 = vmatprep.subr.mxu0 0.0
    %1487 = vmatpush1.msra.mxu0 0.0
    %1488 = vmatprep.subr.mxu0 0.0
    %1489 = vmatpush1.msra.mxu0 0.0
    %1490 = vmatprep.subr.mxu0 0.0
    %1491 = vmatpush1.msra.mxu0 0.0
    %1492 = vmatprep.subr.mxu0 0.0
    %1493 = vmatpush1.msra.mxu0 0.0
    %1494 = vmatprep.subr.mxu0 0.0
    %1495 = vmatpush1.msra.mxu0 0.0
    %1496 = vmatprep.subr.mxu0 0.0
    %1497 = vmatpush1.msra.mxu0 0.0
    %1498 = vmatprep.subr.mxu0 0.0
    %1499 = vmatpush1.msra.mxu0 0.0
    %1500 = vmatprep.subr.mxu0 0.0
    %1501 = vmatpush1.msra.mxu0 0.0
    %1502 = vmatprep.subr.mxu0 0.0
    %1503 = vmatpush1.msra.mxu0 0.0
    %1504 = vmatprep.subr.mxu0 0.0
    %1505 = vmatpush1.msra.mxu0 0.0
    %1506 = vmatprep.subr.mxu0 0.0
    %1507 = vmatpush1.msra.mxu0 0.0
    %1508 = vmatprep.subr.mxu0 0.0
    %1509 = vmatpush1.msra.mxu0 0.0
    %1510 = vmatprep.subr.mxu0 0.0
    %1511 = vmatpush1.msra.mxu0 0.0
    %1512 = vmatprep.subr.mxu0 0.0
    %1513 = vmatpush1.msra.mxu0 0.0
    %1514 = vmatprep.subr.mxu0 0.0
    %1515 = vmatpush1.msra.mxu0 0.0
    %1516 = vmatprep.subr.mxu0 0.0
    %1517 = vmatpush1.msra.mxu0 0.0
    %1518 = vmatprep.subr.mxu0 0.0
    %1519 = vmatpush1.msra.mxu0 0.0
    %1520 = vmatprep.subr.mxu0 0.0
    %1521 = vmatpush1.msra.mxu0 0.0
    %1522 = vmatprep.subr.mxu0 0.0
    %1523 = vmatpush1.msra.mxu0 0.0
    %1524 = vmatprep.subr.mxu0 0.0
    %1525 = vmatpush1.msra.mxu0 0.0
    %1526 = vmatprep.subr.mxu0 0.0
    %1527 = vmatpush1.msra.mxu0 0.0
    %1528 = vmatprep.subr.mxu0 0.0
    %1529 = vmatpush1.msra.mxu0 0.0
    %1530 = vmatprep.subr.mxu0 0.0
    %1531 = vmatpush1.msra.mxu0 0.0
    %1532 = vmatprep.subr.mxu0 0.0
    %1533 = vmatpush1.msra.mxu0 0.0
    %1534 = vmatprep.subr.mxu0 0.0
    %1535 = vmatpush1.msra.mxu0 0.0
    %1536 = vmatprep.mubr.f32.mxu0 0.0
    %1537 = vmatmul.mubr.f32.gmra.mrb[0].mxu0 %v1470
    %v1538 = vpop.f32.mrb[0].mxu0
    %v1539 = vadd.f32 0.0, %v1538
    %v1540 = vpop.f32.mrb[0].mxu0
    %1541 = vdwg.mxu0
    %1542 = vrot.lane.b32.xlu0 %v317, 112
    %v1543 = vpop.permute.xlu0 %1542
    %v1546 = vsel %vm612, %v1309, 0
    %1548 = vmatprep.subr.mxu0 0.0
    %1549 = vmatpush1.msra.mxu0 %v1543
    %1550 = vmatprep.subr.mxu0 0.0
    %1551 = vmatpush1.msra.mxu0 0.0
    %1552 = vmatprep.subr.mxu0 0.0
    %1553 = vmatpush1.msra.mxu0 0.0
    %1554 = vmatprep.subr.mxu0 0.0
    %1555 = vmatpush1.msra.mxu0 0.0
    %1556 = vmatprep.subr.mxu0 0.0
    %1557 = vmatpush1.msra.mxu0 0.0
    %1558 = vmatprep.subr.mxu0 0.0
    %1559 = vmatpush1.msra.mxu0 0.0
    %1560 = vmatprep.subr.mxu0 0.0
    %1561 = vmatpush1.msra.mxu0 0.0
    %1562 = vmatprep.subr.mxu0 0.0
    %1563 = vmatpush1.msra.mxu0 0.0
    %1564 = vmatprep.subr.mxu0 0.0
    %1565 = vmatpush1.msra.mxu0 0.0
    %1566 = vmatprep.subr.mxu0 0.0
    %1567 = vmatpush1.msra.mxu0 0.0
    %1568 = vmatprep.subr.mxu0 0.0
    %1569 = vmatpush1.msra.mxu0 0.0
    %1570 = vmatprep.subr.mxu0 0.0
    %1571 = vmatpush1.msra.mxu0 0.0
    %1572 = vmatprep.subr.mxu0 0.0
    %1573 = vmatpush1.msra.mxu0 0.0
    %1574 = vmatprep.subr.mxu0 0.0
    %1575 = vmatpush1.msra.mxu0 0.0
    %1576 = vmatprep.subr.mxu0 0.0
    %1577 = vmatpush1.msra.mxu0 0.0
    %1578 = vmatprep.subr.mxu0 0.0
    %1579 = vmatpush1.msra.mxu0 0.0
    %1580 = vmatprep.subr.mxu0 0.0
    %1581 = vmatpush1.msra.mxu0 0.0
    %1582 = vmatprep.subr.mxu0 0.0
    %1583 = vmatpush1.msra.mxu0 0.0
    %1584 = vmatprep.subr.mxu0 0.0
    %1585 = vmatpush1.msra.mxu0 0.0
    %1586 = vmatprep.subr.mxu0 0.0
    %1587 = vmatpush1.msra.mxu0 0.0
    %1588 = vmatprep.subr.mxu0 0.0
    %1589 = vmatpush1.msra.mxu0 0.0
    %1590 = vmatprep.subr.mxu0 0.0
    %1591 = vmatpush1.msra.mxu0 0.0
    %1592 = vmatprep.subr.mxu0 0.0
    %1593 = vmatpush1.msra.mxu0 0.0
    %1594 = vmatprep.subr.mxu0 0.0
    %1595 = vmatpush1.msra.mxu0 0.0
    %1596 = vmatprep.subr.mxu0 0.0
    %1597 = vmatpush1.msra.mxu0 0.0
    %1598 = vmatprep.subr.mxu0 0.0
    %1599 = vmatpush1.msra.mxu0 0.0
    %1600 = vmatprep.subr.mxu0 0.0
    %1601 = vmatpush1.msra.mxu0 0.0
    %1602 = vmatprep.subr.mxu0 0.0
    %1603 = vmatpush1.msra.mxu0 0.0
    %1604 = vmatprep.subr.mxu0 0.0
    %1605 = vmatpush1.msra.mxu0 0.0
    %1606 = vmatprep.subr.mxu0 0.0
    %1607 = vmatpush1.msra.mxu0 0.0
    %1608 = vmatprep.subr.mxu0 0.0
    %1609 = vmatpush1.msra.mxu0 0.0
    %1610 = vmatprep.subr.mxu0 0.0
    %1611 = vmatpush1.msra.mxu0 0.0
    %1612 = vmatprep.mubr.f32.mxu0 0.0
    %1613 = vmatmul.mubr.f32.gmra.mrb[0].mxu0 %v1546
    %v1614 = vpop.f32.mrb[0].mxu0
    %v1615 = vadd.f32 0.0, %v1614
    %v1616 = vpop.f32.mrb[0].mxu0
    %1617 = vdwg.mxu0
    %1618 = vrot.lane.b32.xlu0 %v390, 112
    %v1619 = vpop.permute.xlu0 %1618
    %v1622 = vsel %vm612, %v1310, 0
    %1624 = vmatprep.subr.mxu0 0.0
    %1625 = vmatpush1.msra.mxu0 %v1619
    %1626 = vmatprep.subr.mxu0 0.0
    %1627 = vmatpush1.msra.mxu0 0.0
    %1628 = vmatprep.subr.mxu0 0.0
    %1629 = vmatpush1.msra.mxu0 0.0
    %1630 = vmatprep.subr.mxu0 0.0
    %1631 = vmatpush1.msra.mxu0 0.0
    %1632 = vmatprep.subr.mxu0 0.0
    %1633 = vmatpush1.msra.mxu0 0.0
    %1634 = vmatprep.subr.mxu0 0.0
    %1635 = vmatpush1.msra.mxu0 0.0
    %1636 = vmatprep.subr.mxu0 0.0
    %1637 = vmatpush1.msra.mxu0 0.0
    %1638 = vmatprep.subr.mxu0 0.0
    %1639 = vmatpush1.msra.mxu0 0.0
    %1640 = vmatprep.subr.mxu0 0.0
    %1641 = vmatpush1.msra.mxu0 0.0
    %1642 = vmatprep.subr.mxu0 0.0
    %1643 = vmatpush1.msra.mxu0 0.0
    %1644 = vmatprep.subr.mxu0 0.0
    %1645 = vmatpush1.msra.mxu0 0.0
    %1646 = vmatprep.subr.mxu0 0.0
    %1647 = vmatpush1.msra.mxu0 0.0
    %1648 = vmatprep.subr.mxu0 0.0
    %1649 = vmatpush1.msra.mxu0 0.0
    %1650 = vmatprep.subr.mxu0 0.0
    %1651 = vmatpush1.msra.mxu0 0.0
    %1652 = vmatprep.subr.mxu0 0.0
    %1653 = vmatpush1.msra.mxu0 0.0
    %1654 = vmatprep.subr.mxu0 0.0
    %1655 = vmatpush1.msra.mxu0 0.0
    %1656 = vmatprep.subr.mxu0 0.0
    %1657 = vmatpush1.msra.mxu0 0.0
    %1658 = vmatprep.subr.mxu0 0.0
    %1659 = vmatpush1.msra.mxu0 0.0
    %1660 = vmatprep.subr.mxu0 0.0
    %1661 = vmatpush1.msra.mxu0 0.0
    %1662 = vmatprep.subr.mxu0 0.0
    %1663 = vmatpush1.msra.mxu0 0.0
    %1664 = vmatprep.subr.mxu0 0.0
    %1665 = vmatpush1.msra.mxu0 0.0
    %1666 = vmatprep.subr.mxu0 0.0
    %1667 = vmatpush1.msra.mxu0 0.0
    %1668 = vmatprep.subr.mxu0 0.0
    %1669 = vmatpush1.msra.mxu0 0.0
    %1670 = vmatprep.subr.mxu0 0.0
    %1671 = vmatpush1.msra.mxu0 0.0
    %1672 = vmatprep.subr.mxu0 0.0
    %1673 = vmatpush1.msra.mxu0 0.0
    %1674 = vmatprep.subr.mxu0 0.0
    %1675 = vmatpush1.msra.mxu0 0.0
    %1676 = vmatprep.subr.mxu0 0.0
    %1677 = vmatpush1.msra.mxu0 0.0
    %1678 = vmatprep.subr.mxu0 0.0
    %1679 = vmatpush1.msra.mxu0 0.0
    %1680 = vmatprep.subr.mxu0 0.0
    %1681 = vmatpush1.msra.mxu0 0.0
    %1682 = vmatprep.subr.mxu0 0.0
    %1683 = vmatpush1.msra.mxu0 0.0
    %1684 = vmatprep.subr.mxu0 0.0
    %1685 = vmatpush1.msra.mxu0 0.0
    %1686 = vmatprep.subr.mxu0 0.0
    %1687 = vmatpush1.msra.mxu0 0.0
    %1688 = vmatprep.mubr.f32.mxu0 0.0
    %1689 = vmatmul.mubr.f32.gmra.mrb[0].mxu0 %v1622
    %v1690 = vpop.f32.mrb[0].mxu0
    %v1691 = vadd.f32 0.0, %v1690
    %v1692 = vpop.f32.mrb[0].mxu0
    %1693 = vdwg.mxu0
    %1694 = vrot.lane.b32.xlu0 %v460, 112
    %v1695 = vpop.permute.xlu0 %1694
    %v1698 = vsel %vm612, %v1311, 0
    %1700 = vmatprep.subr.mxu0 0.0
    %1701 = vmatpush1.msra.mxu0 %v1695
    %1702 = vmatprep.subr.mxu0 0.0
    %1703 = vmatpush1.msra.mxu0 0.0
    %1704 = vmatprep.subr.mxu0 0.0
    %1705 = vmatpush1.msra.mxu0 0.0
    %1706 = vmatprep.subr.mxu0 0.0
    %1707 = vmatpush1.msra.mxu0 0.0
    %1708 = vmatprep.subr.mxu0 0.0
    %1709 = vmatpush1.msra.mxu0 0.0
    %1710 = vmatprep.subr.mxu0 0.0
    %1711 = vmatpush1.msra.mxu0 0.0
    %1712 = vmatprep.subr.mxu0 0.0
    %1713 = vmatpush1.msra.mxu0 0.0
    %1714 = vmatprep.subr.mxu0 0.0
    %1715 = vmatpush1.msra.mxu0 0.0
    %1716 = vmatprep.subr.mxu0 0.0
    %1717 = vmatpush1.msra.mxu0 0.0
    %1718 = vmatprep.subr.mxu0 0.0
    %1719 = vmatpush1.msra.mxu0 0.0
    %1720 = vmatprep.subr.mxu0 0.0
    %1721 = vmatpush1.msra.mxu0 0.0
    %1722 = vmatprep.subr.mxu0 0.0
    %1723 = vmatpush1.msra.mxu0 0.0
    %1724 = vmatprep.subr.mxu0 0.0
    %1725 = vmatpush1.msra.mxu0 0.0
    %1726 = vmatprep.subr.mxu0 0.0
    %1727 = vmatpush1.msra.mxu0 0.0
    %1728 = vmatprep.subr.mxu0 0.0
    %1729 = vmatpush1.msra.mxu0 0.0
    %1730 = vmatprep.subr.mxu0 0.0
    %1731 = vmatpush1.msra.mxu0 0.0
    %1732 = vmatprep.subr.mxu0 0.0
    %1733 = vmatpush1.msra.mxu0 0.0
    %1734 = vmatprep.subr.mxu0 0.0
    %1735 = vmatpush1.msra.mxu0 0.0
    %1736 = vmatprep.subr.mxu0 0.0
    %1737 = vmatpush1.msra.mxu0 0.0
    %1738 = vmatprep.subr.mxu0 0.0
    %1739 = vmatpush1.msra.mxu0 0.0
    %1740 = vmatprep.subr.mxu0 0.0
    %1741 = vmatpush1.msra.mxu0 0.0
    %1742 = vmatprep.subr.mxu0 0.0
    %1743 = vmatpush1.msra.mxu0 0.0
    %1744 = vmatprep.subr.mxu0 0.0
    %1745 = vmatpush1.msra.mxu0 0.0
    %1746 = vmatprep.subr.mxu0 0.0
    %1747 = vmatpush1.msra.mxu0 0.0
    %1748 = vmatprep.subr.mxu0 0.0
    %1749 = vmatpush1.msra.mxu0 0.0
    %1750 = vmatprep.subr.mxu0 0.0
    %1751 = vmatpush1.msra.mxu0 0.0
    %1752 = vmatprep.subr.mxu0 0.0
    %1753 = vmatpush1.msra.mxu0 0.0
    %1754 = vmatprep.subr.mxu0 0.0
    %1755 = vmatpush1.msra.mxu0 0.0
    %1756 = vmatprep.subr.mxu0 0.0
    %1757 = vmatpush1.msra.mxu0 0.0
    %1758 = vmatprep.subr.mxu0 0.0
    %1759 = vmatpush1.msra.mxu0 0.0
    %1760 = vmatprep.subr.mxu0 0.0
    %1761 = vmatpush1.msra.mxu0 0.0
    %1762 = vmatprep.subr.mxu0 0.0
    %1763 = vmatpush1.msra.mxu0 0.0
    %1764 = vmatprep.mubr.f32.mxu0 0.0
    %1765 = vmatmul.mubr.f32.gmra.mrb[0].mxu0 %v1698
    %v1766 = vpop.f32.mrb[0].mxu0
    %v1767 = vadd.f32 0.0, %v1766
    %v1768 = vpop.f32.mrb[0].mxu0
    %1769 = vdwg.mxu0
    %1770 = vrot.lane.b32.xlu0 %v530, 112
    %v1771 = vpop.permute.xlu0 %1770
    %v1774 = vsel %vm612, %v1312, 0
    %1776 = vmatprep.subr.mxu0 0.0
    %1777 = vmatpush1.msra.mxu0 %v1771
    %1778 = vmatprep.subr.mxu0 0.0
    %1779 = vmatpush1.msra.mxu0 0.0
    %1780 = vmatprep.subr.mxu0 0.0
    %1781 = vmatpush1.msra.mxu0 0.0
    %1782 = vmatprep.subr.mxu0 0.0
    %1783 = vmatpush1.msra.mxu0 0.0
    %1784 = vmatprep.subr.mxu0 0.0
    %1785 = vmatpush1.msra.mxu0 0.0
    %1786 = vmatprep.subr.mxu0 0.0
    %1787 = vmatpush1.msra.mxu0 0.0
    %1788 = vmatprep.subr.mxu0 0.0
    %1789 = vmatpush1.msra.mxu0 0.0
    %1790 = vmatprep.subr.mxu0 0.0
    %1791 = vmatpush1.msra.mxu0 0.0
    %1792 = vmatprep.subr.mxu0 0.0
    %1793 = vmatpush1.msra.mxu0 0.0
    %1794 = vmatprep.subr.mxu0 0.0
    %1795 = vmatpush1.msra.mxu0 0.0
    %1796 = vmatprep.subr.mxu0 0.0
    %1797 = vmatpush1.msra.mxu0 0.0
    %1798 = vmatprep.subr.mxu0 0.0
    %1799 = vmatpush1.msra.mxu0 0.0
    %1800 = vmatprep.subr.mxu0 0.0
    %1801 = vmatpush1.msra.mxu0 0.0
    %1802 = vmatprep.subr.mxu0 0.0
    %1803 = vmatpush1.msra.mxu0 0.0
    %1804 = vmatprep.subr.mxu0 0.0
    %1805 = vmatpush1.msra.mxu0 0.0
    %1806 = vmatprep.subr.mxu0 0.0
    %1807 = vmatpush1.msra.mxu0 0.0
    %1808 = vmatprep.subr.mxu0 0.0
    %1809 = vmatpush1.msra.mxu0 0.0
    %1810 = vmatprep.subr.mxu0 0.0
    %1811 = vmatpush1.msra.mxu0 0.0
    %1812 = vmatprep.subr.mxu0 0.0
    %1813 = vmatpush1.msra.mxu0 0.0
    %1814 = vmatprep.subr.mxu0 0.0
    %1815 = vmatpush1.msra.mxu0 0.0
    %1816 = vmatprep.subr.mxu0 0.0
    %1817 = vmatpush1.msra.mxu0 0.0
    %1818 = vmatprep.subr.mxu0 0.0
    %1819 = vmatpush1.msra.mxu0 0.0
    %1820 = vmatprep.subr.mxu0 0.0
    %1821 = vmatpush1.msra.mxu0 0.0
    %1822 = vmatprep.subr.mxu0 0.0
    %1823 = vmatpush1.msra.mxu0 0.0
    %1824 = vmatprep.subr.mxu0 0.0
    %1825 = vmatpush1.msra.mxu0 0.0
    %1826 = vmatprep.subr.mxu0 0.0
    %1827 = vmatpush1.msra.mxu0 0.0
    %1828 = vmatprep.subr.mxu0 0.0
    %1829 = vmatpush1.msra.mxu0 0.0
    %1830 = vmatprep.subr.mxu0 0.0
    %1831 = vmatpush1.msra.mxu0 0.0
    %1832 = vmatprep.subr.mxu0 0.0
    %1833 = vmatpush1.msra.mxu0 0.0
    %1834 = vmatprep.subr.mxu0 0.0
    %1835 = vmatpush1.msra.mxu0 0.0
    %1836 = vmatprep.subr.mxu0 0.0
    %1837 = vmatpush1.msra.mxu0 0.0
    %1838 = vmatprep.subr.mxu0 0.0
    %1839 = vmatpush1.msra.mxu0 0.0
    %1840 = vmatprep.mubr.f32.mxu0 0.0
    %1841 = vmatmul.mubr.f32.gmra.mrb[0].mxu0 %v1774
    %v1842 = vpop.f32.mrb[0].mxu0
    %v1843 = vadd.f32 0.0, %v1842
    %v1844 = vpop.f32.mrb[0].mxu0
    %1845 = vdwg.mxu0
    %1846 = vrot.lane.b32.xlu0 %v600, 112
    %v1847 = vpop.permute.xlu0 %1846
    %v1850 = vsel %vm612, %v1313, 0
    %1852 = vmatprep.subr.mxu0 0.0
    %1853 = vmatpush1.msra.mxu0 %v1847
    %1854 = vmatprep.subr.mxu0 0.0
    %1855 = vmatpush1.msra.mxu0 0.0
    %1856 = vmatprep.subr.mxu0 0.0
    %1857 = vmatpush1.msra.mxu0 0.0
    %1858 = vmatprep.subr.mxu0 0.0
    %1859 = vmatpush1.msra.mxu0 0.0
    %1860 = vmatprep.subr.mxu0 0.0
    %1861 = vmatpush1.msra.mxu0 0.0
    %1862 = vmatprep.subr.mxu0 0.0
    %1863 = vmatpush1.msra.mxu0 0.0
    %1864 = vmatprep.subr.mxu0 0.0
    %1865 = vmatpush1.msra.mxu0 0.0
    %1866 = vmatprep.subr.mxu0 0.0
    %1867 = vmatpush1.msra.mxu0 0.0
    %1868 = vmatprep.subr.mxu0 0.0
    %1869 = vmatpush1.msra.mxu0 0.0
    %1870 = vmatprep.subr.mxu0 0.0
    %1871 = vmatpush1.msra.mxu0 0.0
    %1872 = vmatprep.subr.mxu0 0.0
    %1873 = vmatpush1.msra.mxu0 0.0
    %1874 = vmatprep.subr.mxu0 0.0
    %1875 = vmatpush1.msra.mxu0 0.0
    %1876 = vmatprep.subr.mxu0 0.0
    %1877 = vmatpush1.msra.mxu0 0.0
    %1878 = vmatprep.subr.mxu0 0.0
    %1879 = vmatpush1.msra.mxu0 0.0
    %1880 = vmatprep.subr.mxu0 0.0
    %1881 = vmatpush1.msra.mxu0 0.0
    %1882 = vmatprep.subr.mxu0 0.0
    %1883 = vmatpush1.msra.mxu0 0.0
    %1884 = vmatprep.subr.mxu0 0.0
    %1885 = vmatpush1.msra.mxu0 0.0
    %1886 = vmatprep.subr.mxu0 0.0
    %1887 = vmatpush1.msra.mxu0 0.0
    %1888 = vmatprep.subr.mxu0 0.0
    %1889 = vmatpush1.msra.mxu0 0.0
    %1890 = vmatprep.subr.mxu0 0.0
    %1891 = vmatpush1.msra.mxu0 0.0
    %1892 = vmatprep.subr.mxu0 0.0
    %1893 = vmatpush1.msra.mxu0 0.0
    %1894 = vmatprep.subr.mxu0 0.0
    %1895 = vmatpush1.msra.mxu0 0.0
    %1896 = vmatprep.subr.mxu0 0.0
    %1897 = vmatpush1.msra.mxu0 0.0
    %1898 = vmatprep.subr.mxu0 0.0
    %1899 = vmatpush1.msra.mxu0 0.0
    %1900 = vmatprep.subr.mxu0 0.0
    %1901 = vmatpush1.msra.mxu0 0.0
    %1902 = vmatprep.subr.mxu0 0.0
    %1903 = vmatpush1.msra.mxu0 0.0
    %1904 = vmatprep.subr.mxu0 0.0
    %1905 = vmatpush1.msra.mxu0 0.0
    %1906 = vmatprep.subr.mxu0 0.0
    %1907 = vmatpush1.msra.mxu0 0.0
    %1908 = vmatprep.subr.mxu0 0.0
    %1909 = vmatpush1.msra.mxu0 0.0
    %1910 = vmatprep.subr.mxu0 0.0
    %1911 = vmatpush1.msra.mxu0 0.0
    %1912 = vmatprep.subr.mxu0 0.0
    %1913 = vmatpush1.msra.mxu0 0.0
    %1914 = vmatprep.subr.mxu0 0.0
    %1915 = vmatpush1.msra.mxu0 0.0
    %1916 = vmatprep.mubr.f32.mxu0 0.0
    %1917 = vmatmul.mubr.f32.gmra.mrb[0].mxu0 %v1850
    %v1918 = vpop.f32.mrb[0].mxu0
    %v1919 = vadd.f32 0.0, %v1918
    %v1920 = vpop.f32.mrb[0].mxu0
    %1921 = vdwg.mxu0
    %v1922 = vld [vmem:[%s2] sm:$0xff]
    %v1923 = vld [vmem:[%s2 + $0x8] sm:$0xff]
    %v1924 = vld [vmem:[%s2 + $0x10] sm:$0xff]
    %v1925 = vld [vmem:[%s2 + $0x18] sm:$0xff]
    %v1927 = vsel %vm612, %v1387, 0
    %1929 = vmatprep.subr.mxu0 0.0
    %1930 = vmatpush1.msra.mxu0 %v1922
    %1931 = vmatprep.subr.mxu0 0.0
    %1932 = vmatpush1.msra.mxu0 0.0
    %1933 = vmatprep.subr.mxu0 0.0
    %1934 = vmatpush1.msra.mxu0 0.0
    %1935 = vmatprep.subr.mxu0 0.0
    %1936 = vmatpush1.msra.mxu0 0.0
    %1937 = vmatprep.subr.mxu0 0.0
    %1938 = vmatpush1.msra.mxu0 0.0
    %1939 = vmatprep.subr.mxu0 0.0
    %1940 = vmatpush1.msra.mxu0 0.0
    %1941 = vmatprep.subr.mxu0 0.0
    %1942 = vmatpush1.msra.mxu0 0.0
    %1943 = vmatprep.subr.mxu0 0.0
    %1944 = vmatpush1.msra.mxu0 0.0
    %1945 = vmatprep.subr.mxu0 0.0
    %1946 = vmatpush1.msra.mxu0 0.0
    %1947 = vmatprep.subr.mxu0 0.0
    %1948 = vmatpush1.msra.mxu0 0.0
    %1949 = vmatprep.subr.mxu0 0.0
    %1950 = vmatpush1.msra.mxu0 0.0
    %1951 = vmatprep.subr.mxu0 0.0
    %1952 = vmatpush1.msra.mxu0 0.0
    %1953 = vmatprep.subr.mxu0 0.0
    %1954 = vmatpush1.msra.mxu0 0.0
    %1955 = vmatprep.subr.mxu0 0.0
    %1956 = vmatpush1.msra.mxu0 0.0
    %1957 = vmatprep.subr.mxu0 0.0
    %1958 = vmatpush1.msra.mxu0 0.0
    %1959 = vmatprep.subr.mxu0 0.0
    %1960 = vmatpush1.msra.mxu0 0.0
    %1961 = vmatprep.subr.mxu0 0.0
    %1962 = vmatpush1.msra.mxu0 0.0
    %1963 = vmatprep.subr.mxu0 0.0
    %1964 = vmatpush1.msra.mxu0 0.0
    %1965 = vmatprep.subr.mxu0 0.0
    %1966 = vmatpush1.msra.mxu0 0.0
    %1967 = vmatprep.subr.mxu0 0.0
    %1968 = vmatpush1.msra.mxu0 0.0
    %1969 = vmatprep.subr.mxu0 0.0
    %1970 = vmatpush1.msra.mxu0 0.0
    %1971 = vmatprep.subr.mxu0 0.0
    %1972 = vmatpush1.msra.mxu0 0.0
    %1973 = vmatprep.subr.mxu0 0.0
    %1974 = vmatpush1.msra.mxu0 0.0
    %1975 = vmatprep.subr.mxu0 0.0
    %1976 = vmatpush1.msra.mxu0 0.0
    %1977 = vmatprep.subr.mxu0 0.0
    %1978 = vmatpush1.msra.mxu0 0.0
    %1979 = vmatprep.subr.mxu0 0.0
    %1980 = vmatpush1.msra.mxu0 0.0
    %1981 = vmatprep.subr.mxu0 0.0
    %1982 = vmatpush1.msra.mxu0 0.0
    %1983 = vmatprep.subr.mxu0 0.0
    %1984 = vmatpush1.msra.mxu0 0.0
    %1985 = vmatprep.subr.mxu0 0.0
    %1986 = vmatpush1.msra.mxu0 0.0
    %1987 = vmatprep.subr.mxu0 0.0
    %1988 = vmatpush1.msra.mxu0 0.0
    %1989 = vmatprep.subr.mxu0 0.0
    %1990 = vmatpush1.msra.mxu0 0.0
    %1991 = vmatprep.subr.mxu0 0.0
    %1992 = vmatpush1.msra.mxu0 0.0
    %1993 = vmatprep.mubr.f32.mxu0 0.0
    %1994 = vmatmul.mubr.f32.gmra.mrb[0].mxu0 %v1927
    %v1995 = vpop.f32.mrb[0].mxu0
    %v1996 = vadd.f32 0.0, %v1995
    %v1997 = vpop.f32.mrb[0].mxu0
    %1998 = vdwg.mxu0
    %v2000 = vsel %vm612, %v1463, 0
    %2002 = vmatprep.subr.mxu0 0.0
    %2003 = vmatpush1.msra.mxu0 %v1923
    %2004 = vmatprep.subr.mxu0 0.0
    %2005 = vmatpush1.msra.mxu0 0.0
    %2006 = vmatprep.subr.mxu0 0.0
    %2007 = vmatpush1.msra.mxu0 0.0
    %2008 = vmatprep.subr.mxu0 0.0
    %2009 = vmatpush1.msra.mxu0 0.0
    %2010 = vmatprep.subr.mxu0 0.0
    %2011 = vmatpush1.msra.mxu0 0.0
    %2012 = vmatprep.subr.mxu0 0.0
    %2013 = vmatpush1.msra.mxu0 0.0
    %2014 = vmatprep.subr.mxu0 0.0
    %2015 = vmatpush1.msra.mxu0 0.0
    %2016 = vmatprep.subr.mxu0 0.0
    %2017 = vmatpush1.msra.mxu0 0.0
    %2018 = vmatprep.subr.mxu0 0.0
    %2019 = vmatpush1.msra.mxu0 0.0
    %2020 = vmatprep.subr.mxu0 0.0
    %2021 = vmatpush1.msra.mxu0 0.0
    %2022 = vmatprep.subr.mxu0 0.0
    %2023 = vmatpush1.msra.mxu0 0.0
    %2024 = vmatprep.subr.mxu0 0.0
    %2025 = vmatpush1.msra.mxu0 0.0
    %2026 = vmatprep.subr.mxu0 0.0
    %2027 = vmatpush1.msra.mxu0 0.0
    %2028 = vmatprep.subr.mxu0 0.0
    %2029 = vmatpush1.msra.mxu0 0.0
    %2030 = vmatprep.subr.mxu0 0.0
    %2031 = vmatpush1.msra.mxu0 0.0
    %2032 = vmatprep.subr.mxu0 0.0
    %2033 = vmatpush1.msra.mxu0 0.0
    %2034 = vmatprep.subr.mxu0 0.0
    %2035 = vmatpush1.msra.mxu0 0.0
    %2036 = vmatprep.subr.mxu0 0.0
    %2037 = vmatpush1.msra.mxu0 0.0
    %2038 = vmatprep.subr.mxu0 0.0
    %2039 = vmatpush1.msra.mxu0 0.0
    %2040 = vmatprep.subr.mxu0 0.0
    %2041 = vmatpush1.msra.mxu0 0.0
    %2042 = vmatprep.subr.mxu0 0.0
    %2043 = vmatpush1.msra.mxu0 0.0
    %2044 = vmatprep.subr.mxu0 0.0
    %2045 = vmatpush1.msra.mxu0 0.0
    %2046 = vmatprep.subr.mxu0 0.0
    %2047 = vmatpush1.msra.mxu0 0.0
    %2048 = vmatprep.subr.mxu0 0.0
    %2049 = vmatpush1.msra.mxu0 0.0
    %2050 = vmatprep.subr.mxu0 0.0
    %2051 = vmatpush1.msra.mxu0 0.0
    %2052 = vmatprep.subr.mxu0 0.0
    %2053 = vmatpush1.msra.mxu0 0.0
    %2054 = vmatprep.subr.mxu0 0.0
    %2055 = vmatpush1.msra.mxu0 0.0
    %2056 = vmatprep.subr.mxu0 0.0
    %2057 = vmatpush1.msra.mxu0 0.0
    %2058 = vmatprep.subr.mxu0 0.0
    %2059 = vmatpush1.msra.mxu0 0.0
    %2060 = vmatprep.subr.mxu0 0.0
    %2061 = vmatpush1.msra.mxu0 0.0
    %2062 = vmatprep.subr.mxu0 0.0
    %2063 = vmatpush1.msra.mxu0 0.0
    %2064 = vmatprep.subr.mxu0 0.0
    %2065 = vmatpush1.msra.mxu0 0.0
    %2066 = vmatprep.mubr.f32.mxu0 0.0
    %2067 = vmatmul.mubr.f32.gmra.mrb[0].mxu0 %v2000
    %v2068 = vpop.f32.mrb[0].mxu0
    %v2069 = vadd.f32 0.0, %v2068
    %v2070 = vpop.f32.mrb[0].mxu0
    %2071 = vdwg.mxu0
    %v2073 = vsel %vm612, %v1539, 0
    %2075 = vmatprep.subr.mxu0 0.0
    %2076 = vmatpush1.msra.mxu0 %v1924
    %2077 = vmatprep.subr.mxu0 0.0
    %2078 = vmatpush1.msra.mxu0 0.0
    %2079 = vmatprep.subr.mxu0 0.0
    %2080 = vmatpush1.msra.mxu0 0.0
    %2081 = vmatprep.subr.mxu0 0.0
    %2082 = vmatpush1.msra.mxu0 0.0
    %2083 = vmatprep.subr.mxu0 0.0
    %2084 = vmatpush1.msra.mxu0 0.0
    %2085 = vmatprep.subr.mxu0 0.0
    %2086 = vmatpush1.msra.mxu0 0.0
    %2087 = vmatprep.subr.mxu0 0.0
    %2088 = vmatpush1.msra.mxu0 0.0
    %2089 = vmatprep.subr.mxu0 0.0
    %2090 = vmatpush1.msra.mxu0 0.0
    %2091 = vmatprep.subr.mxu0 0.0
    %2092 = vmatpush1.msra.mxu0 0.0
    %2093 = vmatprep.subr.mxu0 0.0
    %2094 = vmatpush1.msra.mxu0 0.0
    %2095 = vmatprep.subr.mxu0 0.0
    %2096 = vmatpush1.msra.mxu0 0.0
    %2097 = vmatprep.subr.mxu0 0.0
    %2098 = vmatpush1.msra.mxu0 0.0
    %2099 = vmatprep.subr.mxu0 0.0
    %2100 = vmatpush1.msra.mxu0 0.0
    %2101 = vmatprep.subr.mxu0 0.0
    %2102 = vmatpush1.msra.mxu0 0.0
    %2103 = vmatprep.subr.mxu0 0.0
    %2104 = vmatpush1.msra.mxu0 0.0
    %2105 = vmatprep.subr.mxu0 0.0
    %2106 = vmatpush1.msra.mxu0 0.0
    %2107 = vmatprep.subr.mxu0 0.0
    %2108 = vmatpush1.msra.mxu0 0.0
    %2109 = vmatprep.subr.mxu0 0.0
    %2110 = vmatpush1.msra.mxu0 0.0
    %2111 = vmatprep.subr.mxu0 0.0
    %2112 = vmatpush1.msra.mxu0 0.0
    %2113 = vmatprep.subr.mxu0 0.0
    %2114 = vmatpush1.msra.mxu0 0.0
    %2115 = vmatprep.subr.mxu0 0.0
    %2116 = vmatpush1.msra.mxu0 0.0
    %2117 = vmatprep.subr.mxu0 0.0
    %2118 = vmatpush1.msra.mxu0 0.0
    %2119 = vmatprep.subr.mxu0 0.0
    %2120 = vmatpush1.msra.mxu0 0.0
    %2121 = vmatprep.subr.mxu0 0.0
    %2122 = vmatpush1.msra.mxu0 0.0
    %2123 = vmatprep.subr.mxu0 0.0
    %2124 = vmatpush1.msra.mxu0 0.0
    %2125 = vmatprep.subr.mxu0 0.0
    %2126 = vmatpush1.msra.mxu0 0.0
    %2127 = vmatprep.subr.mxu0 0.0
    %2128 = vmatpush1.msra.mxu0 0.0
    %2129 = vmatprep.subr.mxu0 0.0
    %2130 = vmatpush1.msra.mxu0 0.0
    %2131 = vmatprep.subr.mxu0 0.0
    %2132 = vmatpush1.msra.mxu0 0.0
    %2133 = vmatprep.subr.mxu0 0.0
    %2134 = vmatpush1.msra.mxu0 0.0
    %2135 = vmatprep.subr.mxu0 0.0
    %2136 = vmatpush1.msra.mxu0 0.0
    %2137 = vmatprep.subr.mxu0 0.0
    %2138 = vmatpush1.msra.mxu0 0.0
    %2139 = vmatprep.mubr.f32.mxu0 0.0
    %2140 = vmatmul.mubr.f32.gmra.mrb[0].mxu0 %v2073
    %v2141 = vpop.f32.mrb[0].mxu0
    %v2142 = vadd.f32 0.0, %v2141
    %v2143 = vpop.f32.mrb[0].mxu0
    %2144 = vdwg.mxu0
    %v2146 = vsel %vm612, %v1615, 0
    %2148 = vmatprep.subr.mxu0 0.0
    %2149 = vmatpush1.msra.mxu0 %v1925
    %2150 = vmatprep.subr.mxu0 0.0
    %2151 = vmatpush1.msra.mxu0 0.0
    %2152 = vmatprep.subr.mxu0 0.0
    %2153 = vmatpush1.msra.mxu0 0.0
    %2154 = vmatprep.subr.mxu0 0.0
    %2155 = vmatpush1.msra.mxu0 0.0
    %2156 = vmatprep.subr.mxu0 0.0
    %2157 = vmatpush1.msra.mxu0 0.0
    %2158 = vmatprep.subr.mxu0 0.0
    %2159 = vmatpush1.msra.mxu0 0.0
    %2160 = vmatprep.subr.mxu0 0.0
    %2161 = vmatpush1.msra.mxu0 0.0
    %2162 = vmatprep.subr.mxu0 0.0
    %2163 = vmatpush1.msra.mxu0 0.0
    %2164 = vmatprep.subr.mxu0 0.0
    %2165 = vmatpush1.msra.mxu0 0.0
    %2166 = vmatprep.subr.mxu0 0.0
    %2167 = vmatpush1.msra.mxu0 0.0
    %2168 = vmatprep.subr.mxu0 0.0
    %2169 = vmatpush1.msra.mxu0 0.0
    %2170 = vmatprep.subr.mxu0 0.0
    %2171 = vmatpush1.msra.mxu0 0.0
    %2172 = vmatprep.subr.mxu0 0.0
    %2173 = vmatpush1.msra.mxu0 0.0
    %2174 = vmatprep.subr.mxu0 0.0
    %2175 = vmatpush1.msra.mxu0 0.0
    %2176 = vmatprep.subr.mxu0 0.0
    %2177 = vmatpush1.msra.mxu0 0.0
    %2178 = vmatprep.subr.mxu0 0.0
    %2179 = vmatpush1.msra.mxu0 0.0
    %2180 = vmatprep.subr.mxu0 0.0
    %2181 = vmatpush1.msra.mxu0 0.0
    %2182 = vmatprep.subr.mxu0 0.0
    %2183 = vmatpush1.msra.mxu0 0.0
    %2184 = vmatprep.subr.mxu0 0.0
    %2185 = vmatpush1.msra.mxu0 0.0
    %2186 = vmatprep.subr.mxu0 0.0
    %2187 = vmatpush1.msra.mxu0 0.0
    %2188 = vmatprep.subr.mxu0 0.0
    %2189 = vmatpush1.msra.mxu0 0.0
    %2190 = vmatprep.subr.mxu0 0.0
    %2191 = vmatpush1.msra.mxu0 0.0
    %2192 = vmatprep.subr.mxu0 0.0
    %2193 = vmatpush1.msra.mxu0 0.0
    %2194 = vmatprep.subr.mxu0 0.0
    %2195 = vmatpush1.msra.mxu0 0.0
    %2196 = vmatprep.subr.mxu0 0.0
    %2197 = vmatpush1.msra.mxu0 0.0
    %2198 = vmatprep.subr.mxu0 0.0
    %2199 = vmatpush1.msra.mxu0 0.0
    %2200 = vmatprep.subr.mxu0 0.0
    %2201 = vmatpush1.msra.mxu0 0.0
    %2202 = vmatprep.subr.mxu0 0.0
    %2203 = vmatpush1.msra.mxu0 0.0
    %2204 = vmatprep.subr.mxu0 0.0
    %2205 = vmatpush1.msra.mxu0 0.0
    %2206 = vmatprep.subr.mxu0 0.0
    %2207 = vmatpush1.msra.mxu0 0.0
    %2208 = vmatprep.subr.mxu0 0.0
    %2209 = vmatpush1.msra.mxu0 0.0
    %2210 = vmatprep.subr.mxu0 0.0
    %2211 = vmatpush1.msra.mxu0 0.0
    %2212 = vmatprep.mubr.f32.mxu0 0.0
    %2213 = vmatmul.mubr.f32.gmra.mrb[0].mxu0 %v2146
    %v2214 = vpop.f32.mrb[0].mxu0
    %v2215 = vadd.f32 0.0, %v2214
    %v2216 = vpop.f32.mrb[0].mxu0
    %2217 = vdwg.mxu0
    %v2219 = vsel %vm612, %v1691, 0
    %2221 = vmatprep.subr.mxu0 0.0
    %2222 = vmatpush1.msra.mxu0 %v1922
    %2223 = vmatprep.subr.mxu0 0.0
    %2224 = vmatpush1.msra.mxu0 0.0
    %2225 = vmatprep.subr.mxu0 0.0
    %2226 = vmatpush1.msra.mxu0 0.0
    %2227 = vmatprep.subr.mxu0 0.0
    %2228 = vmatpush1.msra.mxu0 0.0
    %2229 = vmatprep.subr.mxu0 0.0
    %2230 = vmatpush1.msra.mxu0 0.0
    %2231 = vmatprep.subr.mxu0 0.0
    %2232 = vmatpush1.msra.mxu0 0.0
    %2233 = vmatprep.subr.mxu0 0.0
    %2234 = vmatpush1.msra.mxu0 0.0
    %2235 = vmatprep.subr.mxu0 0.0
    %2236 = vmatpush1.msra.mxu0 0.0
    %2237 = vmatprep.subr.mxu0 0.0
    %2238 = vmatpush1.msra.mxu0 0.0
    %2239 = vmatprep.subr.mxu0 0.0
    %2240 = vmatpush1.msra.mxu0 0.0
    %2241 = vmatprep.subr.mxu0 0.0
    %2242 = vmatpush1.msra.mxu0 0.0
    %2243 = vmatprep.subr.mxu0 0.0
    %2244 = vmatpush1.msra.mxu0 0.0
    %2245 = vmatprep.subr.mxu0 0.0
    %2246 = vmatpush1.msra.mxu0 0.0
    %2247 = vmatprep.subr.mxu0 0.0
    %2248 = vmatpush1.msra.mxu0 0.0
    %2249 = vmatprep.subr.mxu0 0.0
    %2250 = vmatpush1.msra.mxu0 0.0
    %2251 = vmatprep.subr.mxu0 0.0
    %2252 = vmatpush1.msra.mxu0 0.0
    %2253 = vmatprep.subr.mxu0 0.0
    %2254 = vmatpush1.msra.mxu0 0.0
    %2255 = vmatprep.subr.mxu0 0.0
    %2256 = vmatpush1.msra.mxu0 0.0
    %2257 = vmatprep.subr.mxu0 0.0
    %2258 = vmatpush1.msra.mxu0 0.0
    %2259 = vmatprep.subr.mxu0 0.0
    %2260 = vmatpush1.msra.mxu0 0.0
    %2261 = vmatprep.subr.mxu0 0.0
    %2262 = vmatpush1.msra.mxu0 0.0
    %2263 = vmatprep.subr.mxu0 0.0
    %2264 = vmatpush1.msra.mxu0 0.0
    %2265 = vmatprep.subr.mxu0 0.0
    %2266 = vmatpush1.msra.mxu0 0.0
    %2267 = vmatprep.subr.mxu0 0.0
    %2268 = vmatpush1.msra.mxu0 0.0
    %2269 = vmatprep.subr.mxu0 0.0
    %2270 = vmatpush1.msra.mxu0 0.0
    %2271 = vmatprep.subr.mxu0 0.0
    %2272 = vmatpush1.msra.mxu0 0.0
    %2273 = vmatprep.subr.mxu0 0.0
    %2274 = vmatpush1.msra.mxu0 0.0
    %2275 = vmatprep.subr.mxu0 0.0
    %2276 = vmatpush1.msra.mxu0 0.0
    %2277 = vmatprep.subr.mxu0 0.0
    %2278 = vmatpush1.msra.mxu0 0.0
    %2279 = vmatprep.subr.mxu0 0.0
    %2280 = vmatpush1.msra.mxu0 0.0
    %2281 = vmatprep.subr.mxu0 0.0
    %2282 = vmatpush1.msra.mxu0 0.0
    %2283 = vmatprep.subr.mxu0 0.0
    %2284 = vmatpush1.msra.mxu0 0.0
    %2285 = vmatprep.mubr.f32.mxu0 0.0
    %2286 = vmatmul.mubr.f32.gmra.mrb[0].mxu0 %v2219
    %v2287 = vpop.f32.mrb[0].mxu0
    %v2288 = vadd.f32 0.0, %v2287
    %v2289 = vpop.f32.mrb[0].mxu0
    %2290 = vdwg.mxu0
    %v2292 = vsel %vm612, %v1767, 0
    %2294 = vmatprep.subr.mxu0 0.0
    %2295 = vmatpush1.msra.mxu0 %v1923
    %2296 = vmatprep.subr.mxu0 0.0
    %2297 = vmatpush1.msra.mxu0 0.0
    %2298 = vmatprep.subr.mxu0 0.0
    %2299 = vmatpush1.msra.mxu0 0.0
    %2300 = vmatprep.subr.mxu0 0.0
    %2301 = vmatpush1.msra.mxu0 0.0
    %2302 = vmatprep.subr.mxu0 0.0
    %2303 = vmatpush1.msra.mxu0 0.0
    %2304 = vmatprep.subr.mxu0 0.0
    %2305 = vmatpush1.msra.mxu0 0.0
    %2306 = vmatprep.subr.mxu0 0.0
    %2307 = vmatpush1.msra.mxu0 0.0
    %2308 = vmatprep.subr.mxu0 0.0
    %2309 = vmatpush1.msra.mxu0 0.0
    %2310 = vmatprep.subr.mxu0 0.0
    %2311 = vmatpush1.msra.mxu0 0.0
    %2312 = vmatprep.subr.mxu0 0.0
    %2313 = vmatpush1.msra.mxu0 0.0
    %2314 = vmatprep.subr.mxu0 0.0
    %2315 = vmatpush1.msra.mxu0 0.0
    %2316 = vmatprep.subr.mxu0 0.0
    %2317 = vmatpush1.msra.mxu0 0.0
    %2318 = vmatprep.subr.mxu0 0.0
    %2319 = vmatpush1.msra.mxu0 0.0
    %2320 = vmatprep.subr.mxu0 0.0
    %2321 = vmatpush1.msra.mxu0 0.0
    %2322 = vmatprep.subr.mxu0 0.0
    %2323 = vmatpush1.msra.mxu0 0.0
    %2324 = vmatprep.subr.mxu0 0.0
    %2325 = vmatpush1.msra.mxu0 0.0
    %2326 = vmatprep.subr.mxu0 0.0
    %2327 = vmatpush1.msra.mxu0 0.0
    %2328 = vmatprep.subr.mxu0 0.0
    %2329 = vmatpush1.msra.mxu0 0.0
    %2330 = vmatprep.subr.mxu0 0.0
    %2331 = vmatpush1.msra.mxu0 0.0
    %2332 = vmatprep.subr.mxu0 0.0
    %2333 = vmatpush1.msra.mxu0 0.0
    %2334 = vmatprep.subr.mxu0 0.0
    %2335 = vmatpush1.msra.mxu0 0.0
    %2336 = vmatprep.subr.mxu0 0.0
    %2337 = vmatpush1.msra.mxu0 0.0
    %2338 = vmatprep.subr.mxu0 0.0
    %2339 = vmatpush1.msra.mxu0 0.0
    %2340 = vmatprep.subr.mxu0 0.0
    %2341 = vmatpush1.msra.mxu0 0.0
    %2342 = vmatprep.subr.mxu0 0.0
    %2343 = vmatpush1.msra.mxu0 0.0
    %2344 = vmatprep.subr.mxu0 0.0
    %2345 = vmatpush1.msra.mxu0 0.0
    %2346 = vmatprep.subr.mxu0 0.0
    %2347 = vmatpush1.msra.mxu0 0.0
    %2348 = vmatprep.subr.mxu0 0.0
    %2349 = vmatpush1.msra.mxu0 0.0
    %2350 = vmatprep.subr.mxu0 0.0
    %2351 = vmatpush1.msra.mxu0 0.0
    %2352 = vmatprep.subr.mxu0 0.0
    %2353 = vmatpush1.msra.mxu0 0.0
    %2354 = vmatprep.subr.mxu0 0.0
    %2355 = vmatpush1.msra.mxu0 0.0
    %2356 = vmatprep.subr.mxu0 0.0
    %2357 = vmatpush1.msra.mxu0 0.0
    %2358 = vmatprep.mubr.f32.mxu0 0.0
    %2359 = vmatmul.mubr.f32.gmra.mrb[0].mxu0 %v2292
    %v2360 = vpop.f32.mrb[0].mxu0
    %v2361 = vadd.f32 0.0, %v2360
    %v2362 = vpop.f32.mrb[0].mxu0
    %2363 = vdwg.mxu0
    %v2365 = vsel %vm612, %v1843, 0
    %2367 = vmatprep.subr.mxu0 0.0
    %2368 = vmatpush1.msra.mxu0 %v1924
    %2369 = vmatprep.subr.mxu0 0.0
    %2370 = vmatpush1.msra.mxu0 0.0
    %2371 = vmatprep.subr.mxu0 0.0
    %2372 = vmatpush1.msra.mxu0 0.0
    %2373 = vmatprep.subr.mxu0 0.0
    %2374 = vmatpush1.msra.mxu0 0.0
    %2375 = vmatprep.subr.mxu0 0.0
    %2376 = vmatpush1.msra.mxu0 0.0
    %2377 = vmatprep.subr.mxu0 0.0
    %2378 = vmatpush1.msra.mxu0 0.0
    %2379 = vmatprep.subr.mxu0 0.0
    %2380 = vmatpush1.msra.mxu0 0.0
    %2381 = vmatprep.subr.mxu0 0.0
    %2382 = vmatpush1.msra.mxu0 0.0
    %2383 = vmatprep.subr.mxu0 0.0
    %2384 = vmatpush1.msra.mxu0 0.0
    %2385 = vmatprep.subr.mxu0 0.0
    %2386 = vmatpush1.msra.mxu0 0.0
    %2387 = vmatprep.subr.mxu0 0.0
    %2388 = vmatpush1.msra.mxu0 0.0
    %2389 = vmatprep.subr.mxu0 0.0
    %2390 = vmatpush1.msra.mxu0 0.0
    %2391 = vmatprep.subr.mxu0 0.0
    %2392 = vmatpush1.msra.mxu0 0.0
    %2393 = vmatprep.subr.mxu0 0.0
    %2394 = vmatpush1.msra.mxu0 0.0
    %2395 = vmatprep.subr.mxu0 0.0
    %2396 = vmatpush1.msra.mxu0 0.0
    %2397 = vmatprep.subr.mxu0 0.0
    %2398 = vmatpush1.msra.mxu0 0.0
    %2399 = vmatprep.subr.mxu0 0.0
    %2400 = vmatpush1.msra.mxu0 0.0
    %2401 = vmatprep.subr.mxu0 0.0
    %2402 = vmatpush1.msra.mxu0 0.0
    %2403 = vmatprep.subr.mxu0 0.0
    %2404 = vmatpush1.msra.mxu0 0.0
    %2405 = vmatprep.subr.mxu0 0.0
    %2406 = vmatpush1.msra.mxu0 0.0
    %2407 = vmatprep.subr.mxu0 0.0
    %2408 = vmatpush1.msra.mxu0 0.0
    %2409 = vmatprep.subr.mxu0 0.0
    %2410 = vmatpush1.msra.mxu0 0.0
    %2411 = vmatprep.subr.mxu0 0.0
    %2412 = vmatpush1.msra.mxu0 0.0
    %2413 = vmatprep.subr.mxu0 0.0
    %2414 = vmatpush1.msra.mxu0 0.0
    %2415 = vmatprep.subr.mxu0 0.0
    %2416 = vmatpush1.msra.mxu0 0.0
    %2417 = vmatprep.subr.mxu0 0.0
    %2418 = vmatpush1.msra.mxu0 0.0
    %2419 = vmatprep.subr.mxu0 0.0
    %2420 = vmatpush1.msra.mxu0 0.0
    %2421 = vmatprep.subr.mxu0 0.0
    %2422 = vmatpush1.msra.mxu0 0.0
    %2423 = vmatprep.subr.mxu0 0.0
    %2424 = vmatpush1.msra.mxu0 0.0
    %2425 = vmatprep.subr.mxu0 0.0
    %2426 = vmatpush1.msra.mxu0 0.0
    %2427 = vmatprep.subr.mxu0 0.0
    %2428 = vmatpush1.msra.mxu0 0.0
    %2429 = vmatprep.subr.mxu0 0.0
    %2430 = vmatpush1.msra.mxu0 0.0
    %2431 = vmatprep.mubr.f32.mxu0 0.0
    %2432 = vmatmul.mubr.f32.gmra.mrb[0].mxu0 %v2365
    %v2433 = vpop.f32.mrb[0].mxu0
    %v2434 = vadd.f32 0.0, %v2433
    %v2435 = vpop.f32.mrb[0].mxu0
    %2436 = vdwg.mxu0
    %v2438 = vsel %vm612, %v1919, 0
    %2440 = vmatprep.subr.mxu0 0.0
    %2441 = vmatpush1.msra.mxu0 %v1925
    %2442 = vmatprep.subr.mxu0 0.0
    %2443 = vmatpush1.msra.mxu0 0.0
    %2444 = vmatprep.subr.mxu0 0.0
    %2445 = vmatpush1.msra.mxu0 0.0
    %2446 = vmatprep.subr.mxu0 0.0
    %2447 = vmatpush1.msra.mxu0 0.0
    %2448 = vmatprep.subr.mxu0 0.0
    %2449 = vmatpush1.msra.mxu0 0.0
    %2450 = vmatprep.subr.mxu0 0.0
    %2451 = vmatpush1.msra.mxu0 0.0
    %2452 = vmatprep.subr.mxu0 0.0
    %2453 = vmatpush1.msra.mxu0 0.0
    %2454 = vmatprep.subr.mxu0 0.0
    %2455 = vmatpush1.msra.mxu0 0.0
    %2456 = vmatprep.subr.mxu0 0.0
    %2457 = vmatpush1.msra.mxu0 0.0
    %2458 = vmatprep.subr.mxu0 0.0
    %2459 = vmatpush1.msra.mxu0 0.0
    %2460 = vmatprep.subr.mxu0 0.0
    %2461 = vmatpush1.msra.mxu0 0.0
    %2462 = vmatprep.subr.mxu0 0.0
    %2463 = vmatpush1.msra.mxu0 0.0
    %2464 = vmatprep.subr.mxu0 0.0
    %2465 = vmatpush1.msra.mxu0 0.0
    %2466 = vmatprep.subr.mxu0 0.0
    %2467 = vmatpush1.msra.mxu0 0.0
    %2468 = vmatprep.subr.mxu0 0.0
    %2469 = vmatpush1.msra.mxu0 0.0
    %2470 = vmatprep.subr.mxu0 0.0
    %2471 = vmatpush1.msra.mxu0 0.0
    %2472 = vmatprep.subr.mxu0 0.0
    %2473 = vmatpush1.msra.mxu0 0.0
    %2474 = vmatprep.subr.mxu0 0.0
    %2475 = vmatpush1.msra.mxu0 0.0
    %2476 = vmatprep.subr.mxu0 0.0
    %2477 = vmatpush1.msra.mxu0 0.0
    %2478 = vmatprep.subr.mxu0 0.0
    %2479 = vmatpush1.msra.mxu0 0.0
    %2480 = vmatprep.subr.mxu0 0.0
    %2481 = vmatpush1.msra.mxu0 0.0
    %2482 = vmatprep.subr.mxu0 0.0
    %2483 = vmatpush1.msra.mxu0 0.0
    %2484 = vmatprep.subr.mxu0 0.0
    %2485 = vmatpush1.msra.mxu0 0.0
    %2486 = vmatprep.subr.mxu0 0.0
    %2487 = vmatpush1.msra.mxu0 0.0
    %2488 = vmatprep.subr.mxu0 0.0
    %2489 = vmatpush1.msra.mxu0 0.0
    %2490 = vmatprep.subr.mxu0 0.0
    %2491 = vmatpush1.msra.mxu0 0.0
    %2492 = vmatprep.subr.mxu0 0.0
    %2493 = vmatpush1.msra.mxu0 0.0
    %2494 = vmatprep.subr.mxu0 0.0
    %2495 = vmatpush1.msra.mxu0 0.0
    %2496 = vmatprep.subr.mxu0 0.0
    %2497 = vmatpush1.msra.mxu0 0.0
    %2498 = vmatprep.subr.mxu0 0.0
    %2499 = vmatpush1.msra.mxu0 0.0
    %2500 = vmatprep.subr.mxu0 0.0
    %2501 = vmatpush1.msra.mxu0 0.0
    %2502 = vmatprep.subr.mxu0 0.0
    %2503 = vmatpush1.msra.mxu0 0.0
    %2504 = vmatprep.mubr.f32.mxu0 0.0
    %2505 = vmatmul.mubr.f32.gmra.mrb[0].mxu0 %v2438
    %v2506 = vpop.f32.mrb[0].mxu0
    %v2507 = vadd.f32 0.0, %v2506
    %v2508 = vpop.f32.mrb[0].mxu0
    %2509 = vdwg.mxu0
    %v2510 = vsel %vm36, %v1996, 0.0
    %v2511 = vsel %vm36, %v2069, 0.0
    %v2512 = vadd.f32 %v2510, %v2511
    %v2513 = vsel %vm36, %v2142, 0.0
    %v2514 = vadd.f32 %v2512, %v2513
    %v2515 = vsel %vm36, %v2215, 0.0
    %v2516 = vadd.f32 %v2514, %v2515
    %v2517 = vsel %vm36, %v2288, 0.0
    %v2518 = vsel %vm36, %v2361, 0.0
    %v2519 = vadd.f32 %v2517, %v2518
    %v2520 = vsel %vm36, %v2434, 0.0
    %v2521 = vadd.f32 %v2519, %v2520
    %v2522 = vsel %vm36, %v2507, 0.0
    %v2523 = vadd.f32 %v2521, %v2522
    %v2524 = vld [vmem:[%s3] sm:$0x1]
    %v2526 = vlaneseq
    %v2527 = vshrl.u32 %v2526, 7
    %v2528 = vsub.s32 0, %v2527
    %v2529 = vrot.slane %v2524, %v2528
    %v2531 = vadd.f32 %v2516, %v2529
    %v2532 = vadd.f32 %v2523, %v2529
    %2533 = vst.msk [vmem:[#allocation2] sm:$0xff] %vm36, %v2531
    %2534 = vst.msk [vmem:[#allocation2 + $0x8] sm:$0xff] %vm36, %v2532
    // Predicated region
    $region18: #{tpu_custom_call.1} parent=1 // pred_check
      _
    $region19: #{tpu_custom_call.1} parent=1 // pred_check_branch
      %2536 = sbr.rel (0) target = $region21
    $region20: #{tpu_custom_call.1} parent=1 // pred_region
      %s2538 = ssub.s32 256, 256
      %2539 = vsyncadd [#allocation3], %s2538
      %s2540 = sshll.u32 [#allocation2], 4
      %s2541 = int_to_ptr.vmem [resolvable:$true] %s2540
      %2546 = dma.vmem_to_hbm [thread:$0]  %s2541, 256, %s4, [#allocation3], 128, 128, 8
    $region21: #{tpu_custom_call.1} parent=1 // pred_fallthru
      _
    // Predicated region
    $region22: #{tpu_custom_call.1} parent=1 // pred_check
      _
    $region23: #{tpu_custom_call.1} parent=1 // pred_check_branch
      %2548 = sbr.rel (0) target = $region25
    $region24: #{tpu_custom_call.1} parent=1 // pred_region
      %2549 = dma.done [#allocation3], 256
    $region25: #{tpu_custom_call.1} parent=1 // pred_fallthru
      _
    %2550 = vsyncpa [#allocation3], 1

</llo_original>
